<compile_context>
chip_gen: v7x
topology: tpu7x:2x2x1
jax: 0.10.0
libtpu: 0.0.40
codegen_flags: <defaults>
</compile_context>

<pallas_src>
import functools

import jax
import jax.numpy as jnp
from jax.experimental import pallas as pl
from jax.experimental.pallas import tpu as pltpu


CPAD = 128  # channel axis padded to one full lane group everywhere

_COMPILER_PARAMS = pltpu.CompilerParams(
    dimension_semantics=("parallel",),
    vmem_limit_bytes=32 * 1024 * 1024,
)


# ----------------------------------------------------------------------------
# In-kernel helpers
# ----------------------------------------------------------------------------

def _accumulate_taps(src_ref, w_ref, mask, ksize, rows):
    """Conv1d as K accumulating per-tap MXU matmuls (no materialized im2col).

    src_ref : f32 VMEM scratch of shape (rows + ksize - 1, CPAD); rows of the
              current activation live at [pad : pad + rows), halo rows are
              uninitialized and are masked off before the matmul.
    w_ref   : bf16 (ksize, CPAD, CPAD) per-tap weight matrices.
    mask    : f32 (rows, ksize) validity mask (handles 'same' padding and
              sample boundaries when several samples are packed along rows).
    """
    acc = None
    for t in range(ksize):
        slab = jnp.where(mask[:, t:t + 1] > 0.0, src_ref[t:t + rows, :], 0.0)
        contrib = jnp.dot(slab.astype(jnp.bfloat16), w_ref[t],
                          preferred_element_type=jnp.float32)
        acc = contrib if acc is None else acc + contrib
    return acc


# ----------------------------------------------------------------------------
# Kernels
# ----------------------------------------------------------------------------

def _stem_kernel(x_ref, mc_ref, mp_ref, w_ref, scale_ref, bias_ref, out_ref,
                 xpad_ref, hpad_ref, *, ksize, rows):
    """conv15 ('same') + folded BN + ReLU + MaxPool1d(k=3, s=1, p=1), fused."""
    pad = (ksize - 1) // 2

    # Only the interior is written; halo rows stay uninitialized (masked later).
    xpad_ref[pad:pad + rows, :] = x_ref[...].astype(jnp.float32)

    mc = mc_ref[...]                                           # (rows, K)
    acc = _accumulate_taps(xpad_ref, w_ref, mc, ksize, rows)   # f32
    h = jnp.maximum(acc * scale_ref[...] + bias_ref[...], 0.0)

    # maxpool3: h >= 0 after ReLU, so masked-off neighbours can be replaced by
    # 0 instead of -inf without changing the max.
    hpad_ref[1:1 + rows, :] = h
    mp = mp_ref[...]                                           # (rows, 3)
    left = jnp.where(mp[:, 0:1] > 0.0, hpad_ref[0:rows, :], 0.0)
    right = jnp.where(mp[:, 2:3] > 0.0, hpad_ref[2:2 + rows, :], 0.0)
    out_ref[...] = jnp.maximum(jnp.maximum(left, h), right).astype(out_ref.dtype)


def _block_kernel(*refs, ksize, rows, has_down):
    """One whole BasicBlock1d; intermediates live in VMEM scratch."""
    if has_down:
        (x_ref, mc_ref, w1_ref, s1_ref, b1_ref, w2_ref, s2_ref, b2_ref,
         wd_ref, sd_ref, bd_ref, out_ref, xpad_ref, hpad_ref) = refs
    else:
        (x_ref, mc_ref, w1_ref, s1_ref, b1_ref, w2_ref, s2_ref, b2_ref,
         out_ref, xpad_ref, hpad_ref) = refs
        wd_ref = sd_ref = bd_ref = None

    pad = (ksize - 1) // 2
    mc = mc_ref[...]                                           # (rows, K)

    # conv1 + bn1 + relu
    xpad_ref[pad:pad + rows, :] = x_ref[...].astype(jnp.float32)
    acc1 = _accumulate_taps(xpad_ref, w1_ref, mc, ksize, rows)
    h = jnp.maximum(acc1 * s1_ref[...] + b1_ref[...], 0.0)
    # TODO(synk): nn.Dropout(p=0.2) is identity in eval mode; omitted.

    # conv2 + bn2
    hpad_ref[pad:pad + rows, :] = h
    acc2 = _accumulate_taps(hpad_ref, w2_ref, mc, ksize, rows)
    y = acc2 * s2_ref[...] + b2_ref[...]

    # residual: re-read x from the pad scratch (short live range), optional
    # 1x1 conv + bn downsample.
    x_again = xpad_ref[pad:pad + rows, :]
    if has_down:
        r = jnp.dot(x_again.astype(jnp.bfloat16), wd_ref[0],
                    preferred_element_type=jnp.float32)
        r = r * sd_ref[...] + bd_ref[...]
    else:
        r = x_again

    out_ref[...] = jnp.maximum(y + r, 0.0).astype(out_ref.dtype)


def _dual_pool_kernel(x_ref, out_ref):
    """AdaptiveAvg/MaxPool1d(L/2) == kernel2/stride2 pools for even L.

    x_ref is (L/2, 2*CPAD): even rows at lanes [0:128], odd rows at [128:256]
    (a free HBM reshape), so no strided access and no selection matmul.
    """
    half = x_ref.shape[0]
    v = x_ref[...].astype(jnp.float32)
    even = v[:, :CPAD]
    odd = v[:, CPAD:]
    out_ref[0:half, :] = (even + odd) * 0.5
    out_ref[half:2 * half, :] = jnp.maximum(even, odd)


# ----------------------------------------------------------------------------
# Wrapper-side parameter re-layout
# ----------------------------------------------------------------------------

def _pad_channels(a, axis, target=CPAD):
    padw = target - a.shape[axis]
    if padw <= 0:
        return a
    widths = [(0, 0)] * a.ndim
    widths[axis] = (0, padw)
    return jnp.pad(a, widths)


def _fold_bn(bn, eps=1e-5):
    inv_std = 1.0 / jnp.sqrt(bn["var"] + eps)
    scale = bn["gamma"] * inv_std
    bias = bn["beta"] - bn["mean"] * scale
    cout = scale.shape[0]
    scale = _pad_channels(scale.reshape(1, cout), 1).astype(jnp.float32)
    bias = _pad_channels(bias.reshape(1, cout), 1).astype(jnp.float32)
    return scale, bias


def _conv_weight_taps(w):
    """PyTorch Conv1d weight (Cout, Cin, K) -> per-tap bf16 (K, CPAD, CPAD)."""
    wt = jnp.transpose(w, (2, 1, 0))                 # (K, Cin, Cout)
    wt = _pad_channels(_pad_channels(wt, 1), 2)      # (K, CPAD, CPAD)
    return wt.astype(jnp.bfloat16)


def _tap_mask(b_tile, length, ksize):
    """(b_tile*length, ksize) f32: mask[p, t] = 1 iff tap t at row p stays
    inside that row's own sample ('same' zero padding at sample boundaries)."""
    pad = (ksize - 1) // 2
    pos = jnp.tile(jnp.arange(length), b_tile)               # (M,)
    src = pos[:, None] + jnp.arange(ksize)[None, :] - pad    # (M, K)
    return ((src >= 0) & (src < length)).astype(jnp.float32)


def _act_spec(rows):
    return pl.BlockSpec((rows, CPAD), lambda i: (i, 0))


def _const_spec(arr):
    zeros = (0,) * arr.ndim
    return pl.BlockSpec(arr.shape, lambda i: zeros)


def _choose_b_tile(n, length, max_rows=1024):
    """Pack several samples per grid step when L is small (fills MXU rows)."""
    best = 1
    for b in range(1, n + 1):
        if n % b:
            continue
        rows = b * length
        if rows > max_rows and b > 1:
            break
        if rows % 8 == 0 or rows == n * length:
            best = b
    return best


# ----------------------------------------------------------------------------
# pallas_call wrappers
# ----------------------------------------------------------------------------

def stem_forward(x_flat, params, *, length, b_tile):
    total_rows = x_flat.shape[0]
    n = total_rows // length
    g = n // b_tile
    m = b_tile * length
    k = params["conv1"].shape[2]
    assert k % 2 == 1
    w = _conv_weight_taps(params["conv1"])
    scale, bias = _fold_bn(params["bn1"])
    mask_c = _tap_mask(b_tile, length, k)
    mask_p = _tap_mask(b_tile, length, 3)
    kern = functools.partial(_stem_kernel, ksize=k, rows=m)
    return pl.pallas_call(
        kern,
        grid=(g,),
        in_specs=[_act_spec(m), _const_spec(mask_c), _const_spec(mask_p),
                  _const_spec(w), _const_spec(scale), _const_spec(bias)],
        out_specs=_act_spec(m),
        out_shape=jax.ShapeDtypeStruct((total_rows, CPAD), jnp.bfloat16),
        scratch_shapes=[pltpu.VMEM((m + k - 1, CPAD), jnp.float32),
                        pltpu.VMEM((m + 2, CPAD), jnp.float32)],
        compiler_params=_COMPILER_PARAMS,
    )(x_flat, mask_c, mask_p, w, scale, bias)


def basic_block_forward(x_flat, p, *, length, b_tile):
    total_rows = x_flat.shape[0]
    n = total_rows // length
    g = n // b_tile
    m = b_tile * length
    k = p["conv1"].shape[2]
    assert k % 2 == 1
    w1 = _conv_weight_taps(p["conv1"])
    s1, b1 = _fold_bn(p["bn1"])
    w2 = _conv_weight_taps(p["conv2"])
    s2, b2 = _fold_bn(p["bn2"])
    mask = _tap_mask(b_tile, length, k)
    has_down = p["down"] is not None

    args = [x_flat, mask, w1, s1, b1, w2, s2, b2]
    specs = [_act_spec(m), _const_spec(mask), _const_spec(w1), _const_spec(s1),
             _const_spec(b1), _const_spec(w2), _const_spec(s2), _const_spec(b2)]
    if has_down:
        wd = _conv_weight_taps(p["down"]["conv"])
        sd, bd = _fold_bn(p["down"]["bn"])
        args += [wd, sd, bd]
        specs += [_const_spec(wd), _const_spec(sd), _const_spec(bd)]

    kern = functools.partial(_block_kernel, ksize=k, rows=m, has_down=has_down)
    return pl.pallas_call(
        kern,
        grid=(g,),
        in_specs=specs,
        out_specs=_act_spec(m),
        out_shape=jax.ShapeDtypeStruct((total_rows, CPAD), jnp.bfloat16),
        scratch_shapes=[pltpu.VMEM((m + k - 1, CPAD), jnp.float32),
                        pltpu.VMEM((m + k - 1, CPAD), jnp.float32)],
        compiler_params=_COMPILER_PARAMS,
    )(*args)


def dual_adaptive_pool(x_flat, *, n, length):
    assert length % 2 == 0
    half = length // 2
    xp = x_flat.reshape(n, half, 2 * CPAD)   # free reshape: even|odd rows in lanes
    return pl.pallas_call(
        _dual_pool_kernel,
        grid=(n,),
        in_specs=[pl.BlockSpec((None, half, 2 * CPAD), lambda i: (i, 0, 0))],
        out_specs=pl.BlockSpec((None, length, CPAD), lambda i: (i, 0, 0)),
        out_shape=jax.ShapeDtypeStruct((n, length, CPAD), jnp.float32),
        compiler_params=_COMPILER_PARAMS,
    )(xp)


# ----------------------------------------------------------------------------
# Deterministic parameter construction (mirrors ResNet1d.__init__)
# ----------------------------------------------------------------------------

def _make_conv(key, cout, cin, k):
    return jax.random.normal(key, (cout, cin, k), jnp.float32) / jnp.sqrt(float(cin * k))


def _make_bn(key, c):
    k1, k2, k3, k4 = jax.random.split(key, 4)
    return dict(
        gamma=1.0 + 0.1 * jax.random.normal(k1, (c,), jnp.float32),
        beta=0.1 * jax.random.normal(k2, (c,), jnp.float32),
        mean=0.1 * jax.random.normal(k3, (c,), jnp.float32),
        var=1.0 + 0.1 * jax.random.uniform(k4, (c,), jnp.float32),
    )


def _make_basic_block(key, inplanes, planes, with_downsample):
    keys = jax.random.split(key, 6)
    p = dict(
        conv1=_make_conv(keys[0], planes, inplanes, 7),
        bn1=_make_bn(keys[1], planes),
        conv2=_make_conv(keys[2], planes, planes, 7),
        bn2=_make_bn(keys[3], planes),
        down=None,
    )
    if with_downsample:
        p["down"] = dict(conv=_make_conv(keys[4], planes, inplanes, 1),
                         bn=_make_bn(keys[5], planes))
    return p


def init_resnet1d_params(key, layers, input_channels=12, inplanes=12):
    n_keys = 2 + sum(layers)
    keys = iter(jax.random.split(key, n_keys))
    params = dict(
        conv1=_make_conv(next(keys), inplanes, input_channels, 15),
        bn1=_make_bn(next(keys), inplanes),
        layers=[],
    )
    cur = inplanes
    for planes, nblocks in zip((64, 64, 64, 12), layers):  # layer1..layer4, stride=1
        blocks = []
        for b in range(nblocks):
            with_down = (b == 0) and (cur != planes)       # expansion == 1
            blocks.append(_make_basic_block(next(keys), cur, planes, with_down))
            cur = planes
        params["layers"].append(blocks)
    return params


# ----------------------------------------------------------------------------
# Forward pass (eval mode)
# ----------------------------------------------------------------------------

def resnet1d_forward(params, x_ncl):
    """x_ncl: (N, 12, seq_len) PyTorch NCL layout. Returns (N, 12, seq_len)."""
    n, _, length = x_ncl.shape
    assert length % 2 == 0  # adaptive pools are exactly k=2/s=2 only for even L

    x = jnp.transpose(x_ncl, (0, 2, 1)).astype(jnp.float32)   # NCL -> NLC
    x = _pad_channels(x, 2)                                   # channels -> 128 lanes, once
    x = x.reshape(n * length, CPAD).astype(jnp.bfloat16)      # lane-dense bf16 rows

    b_tile = _choose_b_tile(n, length)
    x = stem_forward(x, params, length=length, b_tile=b_tile)
    for layer in params["layers"]:
        for blk in layer:
            x = basic_block_forward(x, blk, length=length, b_tile=b_tile)

    pooled = dual_adaptive_pool(x, n=n, length=length)        # (N, L, CPAD) f32
    pooled = pooled[:, :, :12]                                 # drop channel padding
    return jnp.transpose(pooled, (0, 2, 1))                    # == torch.cat((x1,x2), dim=2)


# ----------------------------------------------------------------------------

if __name__ == "__main__":
    key = jax.random.PRNGKey(0)
    kx, kp = jax.random.split(key)

    batch, channels, seq_len = 2, 12, 16     # input_channels fixed at 12 by the module
    layers = [1, 1, 1, 1]                    # small block counts for the test

    x = jax.random.normal(kx, (batch, channels, seq_len), jnp.float32)
    params = init_resnet1d_params(kp, layers)

    out = resnet1d_forward(params, x)
    out = jax.block_until_ready(out)

    assert out.shape == (batch, 12, seq_len), out.shape
    assert bool(jnp.all(jnp.isfinite(out)))
    print("KERNEL_OK")
</pallas_src>

<mosaic_0001>
module attributes {stable_mosaic.version = 11 : i64} {
  func.func @_stem_kernel(%arg0: i32, %arg1: memref<32x128xbf16, #tpu.memory_space<vmem>>, %arg2: memref<32x15xf32, #tpu.memory_space<vmem>>, %arg3: memref<32x3xf32, #tpu.memory_space<vmem>>, %arg4: memref<15x128x128xbf16, #tpu.memory_space<vmem>>, %arg5: memref<1x128xf32, #tpu.memory_space<vmem>>, %arg6: memref<1x128xf32, #tpu.memory_space<vmem>>, %arg7: memref<32x128xbf16, #tpu.memory_space<vmem>>, %arg8: memref<46x128xf32, #tpu.memory_space<vmem>>, %arg9: memref<34x128xf32, #tpu.memory_space<vmem>>) attributes {dimension_semantics = [#tpu.dimension_semantics<parallel>], iteration_bounds = array<i64: 1>, scalar_prefetch = 0 : i64, scratch_operands = 2 : i64, tpu.core_type = #tpu.core_type<tc>, window_params = [{transform_indices = @transform_0, window_bounds = array<i64: 32, 128>}, {pipeline_mode = #tpu.pipeline_mode<synchronous>, transform_indices = @transform_1, window_bounds = array<i64: 32, 15>}, {pipeline_mode = #tpu.pipeline_mode<synchronous>, transform_indices = @transform_2, window_bounds = array<i64: 32, 3>}, {pipeline_mode = #tpu.pipeline_mode<synchronous>, transform_indices = @transform_3, window_bounds = array<i64: 15, 128, 128>}, {pipeline_mode = #tpu.pipeline_mode<synchronous>, transform_indices = @transform_4, window_bounds = array<i64: 1, 128>}, {pipeline_mode = #tpu.pipeline_mode<synchronous>, transform_indices = @transform_5, window_bounds = array<i64: 1, 128>}, {transform_indices = @transform_6, window_bounds = array<i64: 32, 128>}]} {
    %c0 = arith.constant 0 : index
    %c0_0 = arith.constant 0 : index
    %0 = vector.load %arg1[%c0, %c0_0] : memref<32x128xbf16, #tpu.memory_space<vmem>>, vector<32x128xbf16>
    %1 = arith.extf %0 : vector<32x128xbf16> to vector<32x128xf32>
    %c7 = arith.constant 7 : index
    %c0_1 = arith.constant 0 : index
    %2 = vector.load %arg8[%c7, %c0_1] : memref<46x128xf32, #tpu.memory_space<vmem>>, vector<32x128xf32>
    tpu.vector_store %arg8[%c7, %c0_1], %1 {strides = array<i32>} : memref<46x128xf32, #tpu.memory_space<vmem>>, vector<32x128xf32>,
    %c0_2 = arith.constant 0 : index
    %c0_3 = arith.constant 0 : index
    %3 = vector.load %arg2[%c0_2, %c0_3] : memref<32x15xf32, #tpu.memory_space<vmem>>, vector<32x15xf32>
    %4 = vector.extract_strided_slice %3 {offsets = [0, 0], sizes = [32, 1], strides = [1, 1]} : vector<32x15xf32> to vector<32x1xf32>
    %cst = arith.constant 0.000000e+00 : f32
    %5 = vector.broadcast %cst : f32 to vector<32x1xf32>
    %6 = arith.cmpf ogt, %4, %5 : vector<32x1xf32>
    %c0_4 = arith.constant 0 : index
    %c0_5 = arith.constant 0 : index
    %7 = vector.load %arg8[%c0_4, %c0_5] : memref<46x128xf32, #tpu.memory_space<vmem>>, vector<32x128xf32>
    %cst_6 = arith.constant 0.000000e+00 : f32
    %8 = vector.shape_cast %6 : vector<32x1xi1> to vector<32x1xi1>
    %9 = vector.broadcast %8 : vector<32x1xi1> to vector<32x128xi1>
    %10 = vector.broadcast %cst_6 : f32 to vector<32x128xf32>
    %11 = arith.select %9, %7, %10 : vector<32x128xi1>, vector<32x128xf32>
    %12 = arith.truncf %11 : vector<32x128xf32> to vector<32x128xbf16>
    %c0_7 = arith.constant 0 : index
    %c0_8 = arith.constant 0 : index
    %c0_9 = arith.constant 0 : index
    %13 = vector.load %arg4[%c0_7, %c0_8, %c0_9] : memref<15x128x128xbf16, #tpu.memory_space<vmem>>, vector<1x128x128xbf16>
    %14 = vector.shape_cast %13 : vector<1x128x128xbf16> to vector<128x128xbf16>
    %cst_10 = arith.constant dense<0.000000e+00> : vector<32x128xf32>
    %15 = tpu.matmul %12, %14, %cst_10 {dimension_numbers = #tpu.dot_dimension_numbers<[1], [0], [0], [1], [0, 0, 1, 1], [], []>} : vector<32x128xbf16>, vector<128x128xbf16>, vector<32x128xf32> -> vector<32x128xf32>
    %16 = vector.extract_strided_slice %3 {offsets = [0, 1], sizes = [32, 1], strides = [1, 1]} : vector<32x15xf32> to vector<32x1xf32>
    %cst_11 = arith.constant 0.000000e+00 : f32
    %17 = vector.broadcast %cst_11 : f32 to vector<32x1xf32>
    %18 = arith.cmpf ogt, %16, %17 : vector<32x1xf32>
    %c1 = arith.constant 1 : index
    %c0_12 = arith.constant 0 : index
    %19 = vector.load %arg8[%c1, %c0_12] : memref<46x128xf32, #tpu.memory_space<vmem>>, vector<32x128xf32>
    %cst_13 = arith.constant 0.000000e+00 : f32
    %20 = vector.shape_cast %18 : vector<32x1xi1> to vector<32x1xi1>
    %21 = vector.broadcast %20 : vector<32x1xi1> to vector<32x128xi1>
    %22 = vector.broadcast %cst_13 : f32 to vector<32x128xf32>
    %23 = arith.select %21, %19, %22 : vector<32x128xi1>, vector<32x128xf32>
    %24 = arith.truncf %23 : vector<32x128xf32> to vector<32x128xbf16>
    %c1_14 = arith.constant 1 : index
    %c0_15 = arith.constant 0 : index
    %c0_16 = arith.constant 0 : index
    %25 = vector.load %arg4[%c1_14, %c0_15, %c0_16] : memref<15x128x128xbf16, #tpu.memory_space<vmem>>, vector<1x128x128xbf16>
    %26 = vector.shape_cast %25 : vector<1x128x128xbf16> to vector<128x128xbf16>
    %cst_17 = arith.constant dense<0.000000e+00> : vector<32x128xf32>
    %27 = tpu.matmul %24, %26, %cst_17 {dimension_numbers = #tpu.dot_dimension_numbers<[1], [0], [0], [1], [0, 0, 1, 1], [], []>} : vector<32x128xbf16>, vector<128x128xbf16>, vector<32x128xf32> -> vector<32x128xf32>
    %28 = arith.addf %15, %27 : vector<32x128xf32>
    %29 = vector.extract_strided_slice %3 {offsets = [0, 2], sizes = [32, 1], strides = [1, 1]} : vector<32x15xf32> to vector<32x1xf32>
    %cst_18 = arith.constant 0.000000e+00 : f32
    %30 = vector.broadcast %cst_18 : f32 to vector<32x1xf32>
    %31 = arith.cmpf ogt, %29, %30 : vector<32x1xf32>
    %c2 = arith.constant 2 : index
    %c0_19 = arith.constant 0 : index
    %32 = vector.load %arg8[%c2, %c0_19] : memref<46x128xf32, #tpu.memory_space<vmem>>, vector<32x128xf32>
    %cst_20 = arith.constant 0.000000e+00 : f32
    %33 = vector.shape_cast %31 : vector<32x1xi1> to vector<32x1xi1>
    %34 = vector.broadcast %33 : vector<32x1xi1> to vector<32x128xi1>
    %35 = vector.broadcast %cst_20 : f32 to vector<32x128xf32>
    %36 = arith.select %34, %32, %35 : vector<32x128xi1>, vector<32x128xf32>
    %37 = arith.truncf %36 : vector<32x128xf32> to vector<32x128xbf16>
    %c2_21 = arith.constant 2 : index
    %c0_22 = arith.constant 0 : index
    %c0_23 = arith.constant 0 : index
    %38 = vector.load %arg4[%c2_21, %c0_22, %c0_23] : memref<15x128x128xbf16, #tpu.memory_space<vmem>>, vector<1x128x128xbf16>
    %39 = vector.shape_cast %38 : vector<1x128x128xbf16> to vector<128x128xbf16>
    %cst_24 = arith.constant dense<0.000000e+00> : vector<32x128xf32>
    %40 = tpu.matmul %37, %39, %cst_24 {dimension_numbers = #tpu.dot_dimension_numbers<[1], [0], [0], [1], [0, 0, 1, 1], [], []>} : vector<32x128xbf16>, vector<128x128xbf16>, vector<32x128xf32> -> vector<32x128xf32>
    %41 = arith.addf %28, %40 : vector<32x128xf32>
    %42 = vector.extract_strided_slice %3 {offsets = [0, 3], sizes = [32, 1], strides = [1, 1]} : vector<32x15xf32> to vector<32x1xf32>
    %cst_25 = arith.constant 0.000000e+00 : f32
    %43 = vector.broadcast %cst_25 : f32 to vector<32x1xf32>
    %44 = arith.cmpf ogt, %42, %43 : vector<32x1xf32>
    %c3 = arith.constant 3 : index
    %c0_26 = arith.constant 0 : index
    %45 = vector.load %arg8[%c3, %c0_26] : memref<46x128xf32, #tpu.memory_space<vmem>>, vector<32x128xf32>
    %cst_27 = arith.constant 0.000000e+00 : f32
    %46 = vector.shape_cast %44 : vector<32x1xi1> to vector<32x1xi1>
    %47 = vector.broadcast %46 : vector<32x1xi1> to vector<32x128xi1>
    %48 = vector.broadcast %cst_27 : f32 to vector<32x128xf32>
    %49 = arith.select %47, %45, %48 : vector<32x128xi1>, vector<32x128xf32>
    %50 = arith.truncf %49 : vector<32x128xf32> to vector<32x128xbf16>
    %c3_28 = arith.constant 3 : index
    %c0_29 = arith.constant 0 : index
    %c0_30 = arith.constant 0 : index
    %51 = vector.load %arg4[%c3_28, %c0_29, %c0_30] : memref<15x128x128xbf16, #tpu.memory_space<vmem>>, vector<1x128x128xbf16>
    %52 = vector.shape_cast %51 : vector<1x128x128xbf16> to vector<128x128xbf16>
    %cst_31 = arith.constant dense<0.000000e+00> : vector<32x128xf32>
    %53 = tpu.matmul %50, %52, %cst_31 {dimension_numbers = #tpu.dot_dimension_numbers<[1], [0], [0], [1], [0, 0, 1, 1], [], []>} : vector<32x128xbf16>, vector<128x128xbf16>, vector<32x128xf32> -> vector<32x128xf32>
    %54 = arith.addf %41, %53 : vector<32x128xf32>
    %55 = vector.extract_strided_slice %3 {offsets = [0, 4], sizes = [32, 1], strides = [1, 1]} : vector<32x15xf32> to vector<32x1xf32>
    %cst_32 = arith.constant 0.000000e+00 : f32
    %56 = vector.broadcast %cst_32 : f32 to vector<32x1xf32>
    %57 = arith.cmpf ogt, %55, %56 : vector<32x1xf32>
    %c4 = arith.constant 4 : index
    %c0_33 = arith.constant 0 : index
    %58 = vector.load %arg8[%c4, %c0_33] : memref<46x128xf32, #tpu.memory_space<vmem>>, vector<32x128xf32>
    %cst_34 = arith.constant 0.000000e+00 : f32
    %59 = vector.shape_cast %57 : vector<32x1xi1> to vector<32x1xi1>
    %60 = vector.broadcast %59 : vector<32x1xi1> to vector<32x128xi1>
    %61 = vector.broadcast %cst_34 : f32 to vector<32x128xf32>
    %62 = arith.select %60, %58, %61 : vector<32x128xi1>, vector<32x128xf32>
    %63 = arith.truncf %62 : vector<32x128xf32> to vector<32x128xbf16>
    %c4_35 = arith.constant 4 : index
    %c0_36 = arith.constant 0 : index
    %c0_37 = arith.constant 0 : index
    %64 = vector.load %arg4[%c4_35, %c0_36, %c0_37] : memref<15x128x128xbf16, #tpu.memory_space<vmem>>, vector<1x128x128xbf16>
    %65 = vector.shape_cast %64 : vector<1x128x128xbf16> to vector<128x128xbf16>
    %cst_38 = arith.constant dense<0.000000e+00> : vector<32x128xf32>
    %66 = tpu.matmul %63, %65, %cst_38 {dimension_numbers = #tpu.dot_dimension_numbers<[1], [0], [0], [1], [0, 0, 1, 1], [], []>} : vector<32x128xbf16>, vector<128x128xbf16>, vector<32x128xf32> -> vector<32x128xf32>
    %67 = arith.addf %54, %66 : vector<32x128xf32>
    %68 = vector.extract_strided_slice %3 {offsets = [0, 5], sizes = [32, 1], strides = [1, 1]} : vector<32x15xf32> to vector<32x1xf32>
    %cst_39 = arith.constant 0.000000e+00 : f32
    %69 = vector.broadcast %cst_39 : f32 to vector<32x1xf32>
    %70 = arith.cmpf ogt, %68, %69 : vector<32x1xf32>
    %c5 = arith.constant 5 : index
    %c0_40 = arith.constant 0 : index
    %71 = vector.load %arg8[%c5, %c0_40] : memref<46x128xf32, #tpu.memory_space<vmem>>, vector<32x128xf32>
    %cst_41 = arith.constant 0.000000e+00 : f32
    %72 = vector.shape_cast %70 : vector<32x1xi1> to vector<32x1xi1>
    %73 = vector.broadcast %72 : vector<32x1xi1> to vector<32x128xi1>
    %74 = vector.broadcast %cst_41 : f32 to vector<32x128xf32>
    %75 = arith.select %73, %71, %74 : vector<32x128xi1>, vector<32x128xf32>
    %76 = arith.truncf %75 : vector<32x128xf32> to vector<32x128xbf16>
    %c5_42 = arith.constant 5 : index
    %c0_43 = arith.constant 0 : index
    %c0_44 = arith.constant 0 : index
    %77 = vector.load %arg4[%c5_42, %c0_43, %c0_44] : memref<15x128x128xbf16, #tpu.memory_space<vmem>>, vector<1x128x128xbf16>
    %78 = vector.shape_cast %77 : vector<1x128x128xbf16> to vector<128x128xbf16>
    %cst_45 = arith.constant dense<0.000000e+00> : vector<32x128xf32>
    %79 = tpu.matmul %76, %78, %cst_45 {dimension_numbers = #tpu.dot_dimension_numbers<[1], [0], [0], [1], [0, 0, 1, 1], [], []>} : vector<32x128xbf16>, vector<128x128xbf16>, vector<32x128xf32> -> vector<32x128xf32>
    %80 = arith.addf %67, %79 : vector<32x128xf32>
    %81 = vector.extract_strided_slice %3 {offsets = [0, 6], sizes = [32, 1], strides = [1, 1]} : vector<32x15xf32> to vector<32x1xf32>
    %cst_46 = arith.constant 0.000000e+00 : f32
    %82 = vector.broadcast %cst_46 : f32 to vector<32x1xf32>
    %83 = arith.cmpf ogt, %81, %82 : vector<32x1xf32>
    %c6 = arith.constant 6 : index
    %c0_47 = arith.constant 0 : index
    %84 = vector.load %arg8[%c6, %c0_47] : memref<46x128xf32, #tpu.memory_space<vmem>>, vector<32x128xf32>
    %cst_48 = arith.constant 0.000000e+00 : f32
    %85 = vector.shape_cast %83 : vector<32x1xi1> to vector<32x1xi1>
    %86 = vector.broadcast %85 : vector<32x1xi1> to vector<32x128xi1>
    %87 = vector.broadcast %cst_48 : f32 to vector<32x128xf32>
    %88 = arith.select %86, %84, %87 : vector<32x128xi1>, vector<32x128xf32>
    %89 = arith.truncf %88 : vector<32x128xf32> to vector<32x128xbf16>
    %c6_49 = arith.constant 6 : index
    %c0_50 = arith.constant 0 : index
    %c0_51 = arith.constant 0 : index
    %90 = vector.load %arg4[%c6_49, %c0_50, %c0_51] : memref<15x128x128xbf16, #tpu.memory_space<vmem>>, vector<1x128x128xbf16>
    %91 = vector.shape_cast %90 : vector<1x128x128xbf16> to vector<128x128xbf16>
    %cst_52 = arith.constant dense<0.000000e+00> : vector<32x128xf32>
    %92 = tpu.matmul %89, %91, %cst_52 {dimension_numbers = #tpu.dot_dimension_numbers<[1], [0], [0], [1], [0, 0, 1, 1], [], []>} : vector<32x128xbf16>, vector<128x128xbf16>, vector<32x128xf32> -> vector<32x128xf32>
    %93 = arith.addf %80, %92 : vector<32x128xf32>
    %94 = vector.extract_strided_slice %3 {offsets = [0, 7], sizes = [32, 1], strides = [1, 1]} : vector<32x15xf32> to vector<32x1xf32>
    %cst_53 = arith.constant 0.000000e+00 : f32
    %95 = vector.broadcast %cst_53 : f32 to vector<32x1xf32>
    %96 = arith.cmpf ogt, %94, %95 : vector<32x1xf32>
    %c7_54 = arith.constant 7 : index
    %c0_55 = arith.constant 0 : index
    %97 = vector.load %arg8[%c7_54, %c0_55] : memref<46x128xf32, #tpu.memory_space<vmem>>, vector<32x128xf32>
    %cst_56 = arith.constant 0.000000e+00 : f32
    %98 = vector.shape_cast %96 : vector<32x1xi1> to vector<32x1xi1>
    %99 = vector.broadcast %98 : vector<32x1xi1> to vector<32x128xi1>
    %100 = vector.broadcast %cst_56 : f32 to vector<32x128xf32>
    %101 = arith.select %99, %97, %100 : vector<32x128xi1>, vector<32x128xf32>
    %102 = arith.truncf %101 : vector<32x128xf32> to vector<32x128xbf16>
    %c7_57 = arith.constant 7 : index
    %c0_58 = arith.constant 0 : index
    %c0_59 = arith.constant 0 : index
    %103 = vector.load %arg4[%c7_57, %c0_58, %c0_59] : memref<15x128x128xbf16, #tpu.memory_space<vmem>>, vector<1x128x128xbf16>
    %104 = vector.shape_cast %103 : vector<1x128x128xbf16> to vector<128x128xbf16>
    %cst_60 = arith.constant dense<0.000000e+00> : vector<32x128xf32>
    %105 = tpu.matmul %102, %104, %cst_60 {dimension_numbers = #tpu.dot_dimension_numbers<[1], [0], [0], [1], [0, 0, 1, 1], [], []>} : vector<32x128xbf16>, vector<128x128xbf16>, vector<32x128xf32> -> vector<32x128xf32>
    %106 = arith.addf %93, %105 : vector<32x128xf32>
    %107 = vector.extract_strided_slice %3 {offsets = [0, 8], sizes = [32, 1], strides = [1, 1]} : vector<32x15xf32> to vector<32x1xf32>
    %cst_61 = arith.constant 0.000000e+00 : f32
    %108 = vector.broadcast %cst_61 : f32 to vector<32x1xf32>
    %109 = arith.cmpf ogt, %107, %108 : vector<32x1xf32>
    %c8 = arith.constant 8 : index
    %c0_62 = arith.constant 0 : index
    %110 = vector.load %arg8[%c8, %c0_62] : memref<46x128xf32, #tpu.memory_space<vmem>>, vector<32x128xf32>
    %cst_63 = arith.constant 0.000000e+00 : f32
    %111 = vector.shape_cast %109 : vector<32x1xi1> to vector<32x1xi1>
    %112 = vector.broadcast %111 : vector<32x1xi1> to vector<32x128xi1>
    %113 = vector.broadcast %cst_63 : f32 to vector<32x128xf32>
    %114 = arith.select %112, %110, %113 : vector<32x128xi1>, vector<32x128xf32>
    %115 = arith.truncf %114 : vector<32x128xf32> to vector<32x128xbf16>
    %c8_64 = arith.constant 8 : index
    %c0_65 = arith.constant 0 : index
    %c0_66 = arith.constant 0 : index
    %116 = vector.load %arg4[%c8_64, %c0_65, %c0_66] : memref<15x128x128xbf16, #tpu.memory_space<vmem>>, vector<1x128x128xbf16>
    %117 = vector.shape_cast %116 : vector<1x128x128xbf16> to vector<128x128xbf16>
    %cst_67 = arith.constant dense<0.000000e+00> : vector<32x128xf32>
    %118 = tpu.matmul %115, %117, %cst_67 {dimension_numbers = #tpu.dot_dimension_numbers<[1], [0], [0], [1], [0, 0, 1, 1], [], []>} : vector<32x128xbf16>, vector<128x128xbf16>, vector<32x128xf32> -> vector<32x128xf32>
    %119 = arith.addf %106, %118 : vector<32x128xf32>
    %120 = vector.extract_strided_slice %3 {offsets = [0, 9], sizes = [32, 1], strides = [1, 1]} : vector<32x15xf32> to vector<32x1xf32>
    %cst_68 = arith.constant 0.000000e+00 : f32
    %121 = vector.broadcast %cst_68 : f32 to vector<32x1xf32>
    %122 = arith.cmpf ogt, %120, %121 : vector<32x1xf32>
    %c9 = arith.constant 9 : index
    %c0_69 = arith.constant 0 : index
    %123 = vector.load %arg8[%c9, %c0_69] : memref<46x128xf32, #tpu.memory_space<vmem>>, vector<32x128xf32>
    %cst_70 = arith.constant 0.000000e+00 : f32
    %124 = vector.shape_cast %122 : vector<32x1xi1> to vector<32x1xi1>
    %125 = vector.broadcast %124 : vector<32x1xi1> to vector<32x128xi1>
    %126 = vector.broadcast %cst_70 : f32 to vector<32x128xf32>
    %127 = arith.select %125, %123, %126 : vector<32x128xi1>, vector<32x128xf32>
    %128 = arith.truncf %127 : vector<32x128xf32> to vector<32x128xbf16>
    %c9_71 = arith.constant 9 : index
    %c0_72 = arith.constant 0 : index
    %c0_73 = arith.constant 0 : index
    %129 = vector.load %arg4[%c9_71, %c0_72, %c0_73] : memref<15x128x128xbf16, #tpu.memory_space<vmem>>, vector<1x128x128xbf16>
    %130 = vector.shape_cast %129 : vector<1x128x128xbf16> to vector<128x128xbf16>
    %cst_74 = arith.constant dense<0.000000e+00> : vector<32x128xf32>
    %131 = tpu.matmul %128, %130, %cst_74 {dimension_numbers = #tpu.dot_dimension_numbers<[1], [0], [0], [1], [0, 0, 1, 1], [], []>} : vector<32x128xbf16>, vector<128x128xbf16>, vector<32x128xf32> -> vector<32x128xf32>
    %132 = arith.addf %119, %131 : vector<32x128xf32>
    %133 = vector.extract_strided_slice %3 {offsets = [0, 10], sizes = [32, 1], strides = [1, 1]} : vector<32x15xf32> to vector<32x1xf32>
    %cst_75 = arith.constant 0.000000e+00 : f32
    %134 = vector.broadcast %cst_75 : f32 to vector<32x1xf32>
    %135 = arith.cmpf ogt, %133, %134 : vector<32x1xf32>
    %c10 = arith.constant 10 : index
    %c0_76 = arith.constant 0 : index
    %136 = vector.load %arg8[%c10, %c0_76] : memref<46x128xf32, #tpu.memory_space<vmem>>, vector<32x128xf32>
    %cst_77 = arith.constant 0.000000e+00 : f32
    %137 = vector.shape_cast %135 : vector<32x1xi1> to vector<32x1xi1>
    %138 = vector.broadcast %137 : vector<32x1xi1> to vector<32x128xi1>
    %139 = vector.broadcast %cst_77 : f32 to vector<32x128xf32>
    %140 = arith.select %138, %136, %139 : vector<32x128xi1>, vector<32x128xf32>
    %141 = arith.truncf %140 : vector<32x128xf32> to vector<32x128xbf16>
    %c10_78 = arith.constant 10 : index
    %c0_79 = arith.constant 0 : index
    %c0_80 = arith.constant 0 : index
    %142 = vector.load %arg4[%c10_78, %c0_79, %c0_80] : memref<15x128x128xbf16, #tpu.memory_space<vmem>>, vector<1x128x128xbf16>
    %143 = vector.shape_cast %142 : vector<1x128x128xbf16> to vector<128x128xbf16>
    %cst_81 = arith.constant dense<0.000000e+00> : vector<32x128xf32>
    %144 = tpu.matmul %141, %143, %cst_81 {dimension_numbers = #tpu.dot_dimension_numbers<[1], [0], [0], [1], [0, 0, 1, 1], [], []>} : vector<32x128xbf16>, vector<128x128xbf16>, vector<32x128xf32> -> vector<32x128xf32>
    %145 = arith.addf %132, %144 : vector<32x128xf32>
    %146 = vector.extract_strided_slice %3 {offsets = [0, 11], sizes = [32, 1], strides = [1, 1]} : vector<32x15xf32> to vector<32x1xf32>
    %cst_82 = arith.constant 0.000000e+00 : f32
    %147 = vector.broadcast %cst_82 : f32 to vector<32x1xf32>
    %148 = arith.cmpf ogt, %146, %147 : vector<32x1xf32>
    %c11 = arith.constant 11 : index
    %c0_83 = arith.constant 0 : index
    %149 = vector.load %arg8[%c11, %c0_83] : memref<46x128xf32, #tpu.memory_space<vmem>>, vector<32x128xf32>
    %cst_84 = arith.constant 0.000000e+00 : f32
    %150 = vector.shape_cast %148 : vector<32x1xi1> to vector<32x1xi1>
    %151 = vector.broadcast %150 : vector<32x1xi1> to vector<32x128xi1>
    %152 = vector.broadcast %cst_84 : f32 to vector<32x128xf32>
    %153 = arith.select %151, %149, %152 : vector<32x128xi1>, vector<32x128xf32>
    %154 = arith.truncf %153 : vector<32x128xf32> to vector<32x128xbf16>
    %c11_85 = arith.constant 11 : index
    %c0_86 = arith.constant 0 : index
    %c0_87 = arith.constant 0 : index
    %155 = vector.load %arg4[%c11_85, %c0_86, %c0_87] : memref<15x128x128xbf16, #tpu.memory_space<vmem>>, vector<1x128x128xbf16>
    %156 = vector.shape_cast %155 : vector<1x128x128xbf16> to vector<128x128xbf16>
    %cst_88 = arith.constant dense<0.000000e+00> : vector<32x128xf32>
    %157 = tpu.matmul %154, %156, %cst_88 {dimension_numbers = #tpu.dot_dimension_numbers<[1], [0], [0], [1], [0, 0, 1, 1], [], []>} : vector<32x128xbf16>, vector<128x128xbf16>, vector<32x128xf32> -> vector<32x128xf32>
    %158 = arith.addf %145, %157 : vector<32x128xf32>
    %159 = vector.extract_strided_slice %3 {offsets = [0, 12], sizes = [32, 1], strides = [1, 1]} : vector<32x15xf32> to vector<32x1xf32>
    %cst_89 = arith.constant 0.000000e+00 : f32
    %160 = vector.broadcast %cst_89 : f32 to vector<32x1xf32>
    %161 = arith.cmpf ogt, %159, %160 : vector<32x1xf32>
    %c12 = arith.constant 12 : index
    %c0_90 = arith.constant 0 : index
    %162 = vector.load %arg8[%c12, %c0_90] : memref<46x128xf32, #tpu.memory_space<vmem>>, vector<32x128xf32>
    %cst_91 = arith.constant 0.000000e+00 : f32
    %163 = vector.shape_cast %161 : vector<32x1xi1> to vector<32x1xi1>
    %164 = vector.broadcast %163 : vector<32x1xi1> to vector<32x128xi1>
    %165 = vector.broadcast %cst_91 : f32 to vector<32x128xf32>
    %166 = arith.select %164, %162, %165 : vector<32x128xi1>, vector<32x128xf32>
    %167 = arith.truncf %166 : vector<32x128xf32> to vector<32x128xbf16>
    %c12_92 = arith.constant 12 : index
    %c0_93 = arith.constant 0 : index
    %c0_94 = arith.constant 0 : index
    %168 = vector.load %arg4[%c12_92, %c0_93, %c0_94] : memref<15x128x128xbf16, #tpu.memory_space<vmem>>, vector<1x128x128xbf16>
    %169 = vector.shape_cast %168 : vector<1x128x128xbf16> to vector<128x128xbf16>
    %cst_95 = arith.constant dense<0.000000e+00> : vector<32x128xf32>
    %170 = tpu.matmul %167, %169, %cst_95 {dimension_numbers = #tpu.dot_dimension_numbers<[1], [0], [0], [1], [0, 0, 1, 1], [], []>} : vector<32x128xbf16>, vector<128x128xbf16>, vector<32x128xf32> -> vector<32x128xf32>
    %171 = arith.addf %158, %170 : vector<32x128xf32>
    %172 = vector.extract_strided_slice %3 {offsets = [0, 13], sizes = [32, 1], strides = [1, 1]} : vector<32x15xf32> to vector<32x1xf32>
    %cst_96 = arith.constant 0.000000e+00 : f32
    %173 = vector.broadcast %cst_96 : f32 to vector<32x1xf32>
    %174 = arith.cmpf ogt, %172, %173 : vector<32x1xf32>
    %c13 = arith.constant 13 : index
    %c0_97 = arith.constant 0 : index
    %175 = vector.load %arg8[%c13, %c0_97] : memref<46x128xf32, #tpu.memory_space<vmem>>, vector<32x128xf32>
    %cst_98 = arith.constant 0.000000e+00 : f32
    %176 = vector.shape_cast %174 : vector<32x1xi1> to vector<32x1xi1>
    %177 = vector.broadcast %176 : vector<32x1xi1> to vector<32x128xi1>
    %178 = vector.broadcast %cst_98 : f32 to vector<32x128xf32>
    %179 = arith.select %177, %175, %178 : vector<32x128xi1>, vector<32x128xf32>
    %180 = arith.truncf %179 : vector<32x128xf32> to vector<32x128xbf16>
    %c13_99 = arith.constant 13 : index
    %c0_100 = arith.constant 0 : index
    %c0_101 = arith.constant 0 : index
    %181 = vector.load %arg4[%c13_99, %c0_100, %c0_101] : memref<15x128x128xbf16, #tpu.memory_space<vmem>>, vector<1x128x128xbf16>
    %182 = vector.shape_cast %181 : vector<1x128x128xbf16> to vector<128x128xbf16>
    %cst_102 = arith.constant dense<0.000000e+00> : vector<32x128xf32>
    %183 = tpu.matmul %180, %182, %cst_102 {dimension_numbers = #tpu.dot_dimension_numbers<[1], [0], [0], [1], [0, 0, 1, 1], [], []>} : vector<32x128xbf16>, vector<128x128xbf16>, vector<32x128xf32> -> vector<32x128xf32>
    %184 = arith.addf %171, %183 : vector<32x128xf32>
    %185 = vector.extract_strided_slice %3 {offsets = [0, 14], sizes = [32, 1], strides = [1, 1]} : vector<32x15xf32> to vector<32x1xf32>
    %cst_103 = arith.constant 0.000000e+00 : f32
    %186 = vector.broadcast %cst_103 : f32 to vector<32x1xf32>
    %187 = arith.cmpf ogt, %185, %186 : vector<32x1xf32>
    %c14 = arith.constant 14 : index
    %c0_104 = arith.constant 0 : index
    %188 = vector.load %arg8[%c14, %c0_104] : memref<46x128xf32, #tpu.memory_space<vmem>>, vector<32x128xf32>
    %cst_105 = arith.constant 0.000000e+00 : f32
    %189 = vector.shape_cast %187 : vector<32x1xi1> to vector<32x1xi1>
    %190 = vector.broadcast %189 : vector<32x1xi1> to vector<32x128xi1>
    %191 = vector.broadcast %cst_105 : f32 to vector<32x128xf32>
    %192 = arith.select %190, %188, %191 : vector<32x128xi1>, vector<32x128xf32>
    %193 = arith.truncf %192 : vector<32x128xf32> to vector<32x128xbf16>
    %c14_106 = arith.constant 14 : index
    %c0_107 = arith.constant 0 : index
    %c0_108 = arith.constant 0 : index
    %194 = vector.load %arg4[%c14_106, %c0_107, %c0_108] : memref<15x128x128xbf16, #tpu.memory_space<vmem>>, vector<1x128x128xbf16>
    %195 = vector.shape_cast %194 : vector<1x128x128xbf16> to vector<128x128xbf16>
    %cst_109 = arith.constant dense<0.000000e+00> : vector<32x128xf32>
    %196 = tpu.matmul %193, %195, %cst_109 {dimension_numbers = #tpu.dot_dimension_numbers<[1], [0], [0], [1], [0, 0, 1, 1], [], []>} : vector<32x128xbf16>, vector<128x128xbf16>, vector<32x128xf32> -> vector<32x128xf32>
    %197 = arith.addf %184, %196 : vector<32x128xf32>
    %c0_110 = arith.constant 0 : index
    %c0_111 = arith.constant 0 : index
    %198 = vector.load %arg5[%c0_110, %c0_111] : memref<1x128xf32, #tpu.memory_space<vmem>>, vector<1x128xf32>
    %199 = vector.broadcast %198 : vector<1x128xf32> to vector<32x128xf32>
    %200 = arith.mulf %197, %199 : vector<32x128xf32>
    %c0_112 = arith.constant 0 : index
    %c0_113 = arith.constant 0 : index
    %201 = vector.load %arg6[%c0_112, %c0_113] : memref<1x128xf32, #tpu.memory_space<vmem>>, vector<1x128xf32>
    %202 = vector.broadcast %201 : vector<1x128xf32> to vector<32x128xf32>
    %203 = arith.addf %200, %202 : vector<32x128xf32>
    %cst_114 = arith.constant 0.000000e+00 : f32
    %204 = vector.broadcast %cst_114 : f32 to vector<32x128xf32>
    %205 = arith.maximumf %203, %204 : vector<32x128xf32>
    %c1_115 = arith.constant 1 : index
    %c0_116 = arith.constant 0 : index
    %206 = vector.load %arg9[%c1_115, %c0_116] : memref<34x128xf32, #tpu.memory_space<vmem>>, vector<32x128xf32>
    tpu.vector_store %arg9[%c1_115, %c0_116], %205 {strides = array<i32>} : memref<34x128xf32, #tpu.memory_space<vmem>>, vector<32x128xf32>,
    %c0_117 = arith.constant 0 : index
    %c0_118 = arith.constant 0 : index
    %207 = vector.load %arg3[%c0_117, %c0_118] : memref<32x3xf32, #tpu.memory_space<vmem>>, vector<32x3xf32>
    %208 = vector.extract_strided_slice %207 {offsets = [0, 0], sizes = [32, 1], strides = [1, 1]} : vector<32x3xf32> to vector<32x1xf32>
    %cst_119 = arith.constant 0.000000e+00 : f32
    %209 = vector.broadcast %cst_119 : f32 to vector<32x1xf32>
    %210 = arith.cmpf ogt, %208, %209 : vector<32x1xf32>
    %c0_120 = arith.constant 0 : index
    %c0_121 = arith.constant 0 : index
    %211 = vector.load %arg9[%c0_120, %c0_121] : memref<34x128xf32, #tpu.memory_space<vmem>>, vector<32x128xf32>
    %cst_122 = arith.constant 0.000000e+00 : f32
    %212 = vector.shape_cast %210 : vector<32x1xi1> to vector<32x1xi1>
    %213 = vector.broadcast %212 : vector<32x1xi1> to vector<32x128xi1>
    %214 = vector.broadcast %cst_122 : f32 to vector<32x128xf32>
    %215 = arith.select %213, %211, %214 : vector<32x128xi1>, vector<32x128xf32>
    %216 = vector.extract_strided_slice %207 {offsets = [0, 2], sizes = [32, 1], strides = [1, 1]} : vector<32x3xf32> to vector<32x1xf32>
    %cst_123 = arith.constant 0.000000e+00 : f32
    %217 = vector.broadcast %cst_123 : f32 to vector<32x1xf32>
    %218 = arith.cmpf ogt, %216, %217 : vector<32x1xf32>
    %c2_124 = arith.constant 2 : index
    %c0_125 = arith.constant 0 : index
    %219 = vector.load %arg9[%c2_124, %c0_125] : memref<34x128xf32, #tpu.memory_space<vmem>>, vector<32x128xf32>
    %cst_126 = arith.constant 0.000000e+00 : f32
    %220 = vector.shape_cast %218 : vector<32x1xi1> to vector<32x1xi1>
    %221 = vector.broadcast %220 : vector<32x1xi1> to vector<32x128xi1>
    %222 = vector.broadcast %cst_126 : f32 to vector<32x128xf32>
    %223 = arith.select %221, %219, %222 : vector<32x128xi1>, vector<32x128xf32>
    %224 = arith.maximumf %215, %205 : vector<32x128xf32>
    %225 = arith.maximumf %224, %223 : vector<32x128xf32>
    %226 = arith.truncf %225 : vector<32x128xf32> to vector<32x128xbf16>
    %c0_127 = arith.constant 0 : index
    %c0_128 = arith.constant 0 : index
    %227 = vector.load %arg7[%c0_127, %c0_128] : memref<32x128xbf16, #tpu.memory_space<vmem>>, vector<32x128xbf16>
    tpu.vector_store %arg7[%c0_127, %c0_128], %226 {strides = array<i32>} : memref<32x128xbf16, #tpu.memory_space<vmem>>, vector<32x128xbf16>,
    return
  }
  func.func @transform_0(%arg0: i32) -> (i32, i32) {
    %c0_i32 = arith.constant 0 : i32
    %c0_i32_0 = arith.constant 0 : i32
    return %arg0, %c0_i32 : i32, i32
  }
  func.func @transform_1(%arg0: i32) -> (i32, i32) {
    %c0_i32 = arith.constant 0 : i32
    %c0_i32_0 = arith.constant 0 : i32
    %c0_i32_1 = arith.constant 0 : i32
    return %c0_i32, %c0_i32_0 : i32, i32
  }
  func.func @transform_2(%arg0: i32) -> (i32, i32) {
    %c0_i32 = arith.constant 0 : i32
    %c0_i32_0 = arith.constant 0 : i32
    %c0_i32_1 = arith.constant 0 : i32
    return %c0_i32, %c0_i32_0 : i32, i32
  }
  func.func @transform_3(%arg0: i32) -> (i32, i32, i32) {
    %c0_i32 = arith.constant 0 : i32
    %c0_i32_0 = arith.constant 0 : i32
    %c0_i32_1 = arith.constant 0 : i32
    %c0_i32_2 = arith.constant 0 : i32
    return %c0_i32, %c0_i32_0, %c0_i32_1 : i32, i32, i32
  }
  func.func @transform_4(%arg0: i32) -> (i32, i32) {
    %c0_i32 = arith.constant 0 : i32
    %c0_i32_0 = arith.constant 0 : i32
    %c0_i32_1 = arith.constant 0 : i32
    return %c0_i32, %c0_i32_0 : i32, i32
  }
  func.func @transform_5(%arg0: i32) -> (i32, i32) {
    %c0_i32 = arith.constant 0 : i32
    %c0_i32_0 = arith.constant 0 : i32
    %c0_i32_1 = arith.constant 0 : i32
    return %c0_i32, %c0_i32_0 : i32, i32
  }
  func.func @transform_6(%arg0: i32) -> (i32, i32) {
    %c0_i32 = arith.constant 0 : i32
    %c0_i32_0 = arith.constant 0 : i32
    return %arg0, %c0_i32 : i32, i32
  }
}

</mosaic_0001>

<llo_original>
// kernel: tpu_custom_call.1
$region0: #{tpu_custom_call.1}
  #allocation0 [shape = 'u32[]', space=smem, size = 0x4, offset = 0x4, fixed_abs, tag = 'smem constant byte address 0x4 - core index']
  #allocation1 [shape = 'u32[144,128]{1,0:T(1,128)}', space=vmem, size = 0x12000, scoped, tag = 'internal scratch']
  #allocation2 [shape = 'f32[46,128]{1,0:T(8,128)}', space=vmem, size = 0x6000, scoped, tag = 'scratch operand']
  #allocation3 [shape = 'f32[34,128]{1,0:T(8,128)}', space=vmem, size = 0x5000, scoped, tag = 'scratch operand']
  %s0 = inlined_call_operand.vmem [shape: bf16[32,128], index: 0, kind: input, shape index: {}]
  %s1 = inlined_call_operand.vmem [shape: f32[32,15], index: 1, kind: input, shape index: {}]
  %s2 = inlined_call_operand.vmem [shape: f32[32,3], index: 2, kind: input, shape index: {}]
  %s3 = inlined_call_operand.hbm [shape: bf16[15,128,128], index: 3, kind: input, shape index: {}]
  %s4 = inlined_call_operand.vmem [shape: f32[1,128], index: 4, kind: input, shape index: {}]
  %s5 = inlined_call_operand.vmem [shape: f32[1,128], index: 5, kind: input, shape index: {}]
  %s6 = inlined_call_operand.hbm [shape: bf16[32,128], index: 6, kind: output, shape index: {}]
  %s7 = sld [smem:[#allocation0]]
  $region38: #{tpu_custom_call.1} parent=0
    _
  %s9 = ssub.s32 1, %s7
  %s10 = scalar_select 0, %s9, %s7
  $region1: #{tpu_custom_call.1} parent=0
    #allocation4 [shape = 'u8[491520]{0}', space=vmem, size = 0x78000, scoped, tag = 'input window, operand 3, single buffered']
    #allocation5 [shape = 's32[1]{0}', space=sflag, size = 0x4, scoped, tag = 'scoped memory for tpu_custom_call.1']
    #allocation6 [shape = 's32[1]{0}', space=sflag, size = 0x4, scoped, tag = 'scoped memory for tpu_custom_call.1']
    #allocation7 [shape = 'u8[8192]{0}', space=vmem, size = 0x2000, scoped, tag = 'output window, operand 0, single buffered']
    %11 = vsyncpa [#allocation5], 0
    %12 = vsyncpa [#allocation6], 0
    // Predicated region
    $region2: #{tpu_custom_call.1} parent=1 // pred_check
      _
    $region3: #{tpu_custom_call.1} parent=1 // pred_check_branch
      %14 = sbr.rel (0) target = $region5
    $region4: #{tpu_custom_call.1} parent=1 // pred_region
      _
    $region5: #{tpu_custom_call.1} parent=1 // pred_fallthru
      _
    // Predicated region
    $region6: #{tpu_custom_call.1} parent=1 // pred_check
      _
    $region7: #{tpu_custom_call.1} parent=1 // pred_check_branch
      %16 = sbr.rel (0) target = $region9
    $region8: #{tpu_custom_call.1} parent=1 // pred_region
      _
    $region9: #{tpu_custom_call.1} parent=1 // pred_fallthru
      _
    // Predicated region
    $region10: #{tpu_custom_call.1} parent=1 // pred_check
      _
    $region11: #{tpu_custom_call.1} parent=1 // pred_check_branch
      %18 = sbr.rel (0) target = $region13
    $region12: #{tpu_custom_call.1} parent=1 // pred_region
      _
    $region13: #{tpu_custom_call.1} parent=1 // pred_fallthru
      _
    // Predicated region
    $region14: #{tpu_custom_call.1} parent=1 // pred_check
      _
    $region15: #{tpu_custom_call.1} parent=1 // pred_check_branch
      %20 = sbr.rel (0) target = $region17
    $region16: #{tpu_custom_call.1} parent=1 // pred_region
      %s22 = ssub.s32 15360, 15360
      %23 = vsyncadd [#allocation5], %s22
      %s24 = sshll.u32 [#allocation4], 4
      %s25 = int_to_ptr.vmem [resolvable:$true] %s24
      %30 = dma.hbm_to_vmem [thread:$0]  %s3, 15360, %s25, [#allocation5], 64, 64, 4
    $region17: #{tpu_custom_call.1} parent=1 // pred_fallthru
      _
    // Predicated region
    $region18: #{tpu_custom_call.1} parent=1 // pred_check
      _
    $region19: #{tpu_custom_call.1} parent=1 // pred_check_branch
      %32 = sbr.rel (0) target = $region21
    $region20: #{tpu_custom_call.1} parent=1 // pred_region
      _
    $region21: #{tpu_custom_call.1} parent=1 // pred_fallthru
      _
    // Predicated region
    $region22: #{tpu_custom_call.1} parent=1 // pred_check
      _
    $region23: #{tpu_custom_call.1} parent=1 // pred_check_branch
      %34 = sbr.rel (0) target = $region25
    $region24: #{tpu_custom_call.1} parent=1 // pred_region
      _
    $region25: #{tpu_custom_call.1} parent=1 // pred_fallthru
      _
    // Predicated region
    $region26: #{tpu_custom_call.1} parent=1 // pred_check
      _
    $region27: #{tpu_custom_call.1} parent=1 // pred_check_branch
      %36 = sbr.rel (0) target = $region29
    $region28: #{tpu_custom_call.1} parent=1 // pred_region
      %37 = dma.done [#allocation5], 15360
    $region29: #{tpu_custom_call.1} parent=1 // pred_fallthru
      _
    %v39 = vld [vmem:[%s0] sm:$0xf]
    %v40 = vld [vmem:[%s0 + $0x4] sm:$0xf]
    %v41 = vld [vmem:[%s0 + $0x8] sm:$0xf]
    %v42 = vld [vmem:[%s0 + $0xc] sm:$0xf]
    %v43 = vunpack.c.l.bf16 %v39
    %v44 = vunpack.c.l.bf16 %v40
    %v45 = vunpack.c.l.bf16 %v41
    %v46 = vunpack.c.l.bf16 %v42
    %47 = vst [vmem:[#allocation2 + $0x7] sm:$0xff] %v43
    %48 = vst [vmem:[#allocation2 + $0xf] sm:$0xff] %v44
    %49 = vst [vmem:[#allocation2 + $0x17] sm:$0xff] %v45
    %50 = vst [vmem:[#allocation2 + $0x1f] sm:$0xff] %v46
    %v51 = vld [vmem:[%s1] sm:$0xff]
    %v52 = vld [vmem:[%s1 + $0x8] sm:$0xff]
    %v53 = vld [vmem:[%s1 + $0x10] sm:$0xff]
    %v54 = vld [vmem:[%s1 + $0x18] sm:$0xff]
    %vm55 = vcmp.gt.f32.partialorder %v51, 0.0
    %vm56 = vcmp.gt.f32.partialorder %v52, 0.0
    %vm57 = vcmp.gt.f32.partialorder %v53, 0.0
    %vm58 = vcmp.gt.f32.partialorder %v54, 0.0
    %v59 = vld [vmem:[#allocation2] sm:$0xff]
    %v60 = vld [vmem:[#allocation2 + $0x8] sm:$0xff]
    %v61 = vld [vmem:[#allocation2 + $0x10] sm:$0xff]
    %v62 = vld [vmem:[#allocation2 + $0x18] sm:$0xff]
    %v63 = vsel %vm55, 1, 0
    %v64 = vsel %vm56, 1, 0
    %v65 = vsel %vm57, 1, 0
    %v66 = vsel %vm58, 1, 0
    %67 = vset.pattern.permute.xlu0 0
    %68 = vperm.xlu0 %67, %v63
    %v69 = vpop.permute.xlu0 %68
    %70 = vset.pattern.permute.xlu0 0
    %71 = vperm.xlu0 %70, %v64
    %v72 = vpop.permute.xlu0 %71
    %73 = vset.pattern.permute.xlu0 0
    %74 = vperm.xlu0 %73, %v65
    %v75 = vpop.permute.xlu0 %74
    %76 = vset.pattern.permute.xlu0 0
    %77 = vperm.xlu0 %76, %v66
    %v78 = vpop.permute.xlu0 %77
    %vm79 = vcmp.eq.s32.totalorder %v69, 1
    %vm80 = vcmp.eq.s32.totalorder %v72, 1
    %vm81 = vcmp.eq.s32.totalorder %v75, 1
    %vm82 = vcmp.eq.s32.totalorder %v78, 1
    %v83 = vsel %vm79, %v59, 0.0
    %v84 = vsel %vm80, %v60, 0.0
    %v85 = vsel %vm81, %v61, 0.0
    %v86 = vsel %vm82, %v62, 0.0
    %v87 = vpack.c.bf16 %v84, %v83
    %v88 = vpack.c.bf16 %v86, %v85
    %v89 = vld [vmem:[#allocation4] sm:$0xf]
    %v90 = vld [vmem:[#allocation4 + $0x4] sm:$0xf]
    %v91 = vld [vmem:[#allocation4 + $0x8] sm:$0xf]
    %v92 = vld [vmem:[#allocation4 + $0xc] sm:$0xf]
    %v93 = vld [vmem:[#allocation4 + $0x10] sm:$0xf]
    %v94 = vld [vmem:[#allocation4 + $0x14] sm:$0xf]
    %v95 = vld [vmem:[#allocation4 + $0x18] sm:$0xf]
    %v96 = vld [vmem:[#allocation4 + $0x1c] sm:$0xf]
    %v97 = vld [vmem:[#allocation4 + $0x20] sm:$0xf]
    %v98 = vld [vmem:[#allocation4 + $0x24] sm:$0xf]
    %v99 = vld [vmem:[#allocation4 + $0x28] sm:$0xf]
    %v100 = vld [vmem:[#allocation4 + $0x2c] sm:$0xf]
    %v101 = vld [vmem:[#allocation4 + $0x30] sm:$0xf]
    %v102 = vld [vmem:[#allocation4 + $0x34] sm:$0xf]
    %v103 = vld [vmem:[#allocation4 + $0x38] sm:$0xf]
    %v104 = vld [vmem:[#allocation4 + $0x3c] sm:$0xf]
    %v105 = vld [vmem:[#allocation2 + $0x1] sm:$0xff]
    %v106 = vld [vmem:[#allocation2 + $0x9] sm:$0xff]
    %v107 = vld [vmem:[#allocation2 + $0x11] sm:$0xff]
    %v108 = vld [vmem:[#allocation2 + $0x19] sm:$0xff]
    %109 = vset.pattern.permute.xlu0 1
    %110 = vperm.xlu0 %109, %v63
    %v111 = vpop.permute.xlu0 %110
    %112 = vset.pattern.permute.xlu0 1
    %113 = vperm.xlu0 %112, %v64
    %v114 = vpop.permute.xlu0 %113
    %115 = vset.pattern.permute.xlu0 1
    %116 = vperm.xlu0 %115, %v65
    %v117 = vpop.permute.xlu0 %116
    %118 = vset.pattern.permute.xlu0 1
    %119 = vperm.xlu0 %118, %v66
    %v120 = vpop.permute.xlu0 %119
    %vm121 = vcmp.eq.s32.totalorder %v111, 1
    %vm122 = vcmp.eq.s32.totalorder %v114, 1
    %vm123 = vcmp.eq.s32.totalorder %v117, 1
    %vm124 = vcmp.eq.s32.totalorder %v120, 1
    %v125 = vsel %vm121, %v105, 0.0
    %v126 = vsel %vm122, %v106, 0.0
    %v127 = vsel %vm123, %v107, 0.0
    %v128 = vsel %vm124, %v108, 0.0
    %v129 = vpack.c.bf16 %v126, %v125
    %v130 = vpack.c.bf16 %v128, %v127
    %s131 = scalar_lea.vmem [#allocation4], 64
    %v132 = vld [vmem:[%s131] sm:$0xf]
    %v133 = vld [vmem:[%s131 + $0x4] sm:$0xf]
    %v134 = vld [vmem:[%s131 + $0x8] sm:$0xf]
    %v135 = vld [vmem:[%s131 + $0xc] sm:$0xf]
    %v136 = vld [vmem:[%s131 + $0x10] sm:$0xf]
    %v137 = vld [vmem:[%s131 + $0x14] sm:$0xf]
    %v138 = vld [vmem:[%s131 + $0x18] sm:$0xf]
    %v139 = vld [vmem:[%s131 + $0x1c] sm:$0xf]
    %v140 = vld [vmem:[%s131 + $0x20] sm:$0xf]
    %v141 = vld [vmem:[%s131 + $0x24] sm:$0xf]
    %v142 = vld [vmem:[%s131 + $0x28] sm:$0xf]
    %v143 = vld [vmem:[%s131 + $0x2c] sm:$0xf]
    %v144 = vld [vmem:[%s131 + $0x30] sm:$0xf]
    %v145 = vld [vmem:[%s131 + $0x34] sm:$0xf]
    %v146 = vld [vmem:[%s131 + $0x38] sm:$0xf]
    %v147 = vld [vmem:[%s131 + $0x3c] sm:$0xf]
    %v164 = vunpack.c.l.b16 %v132
    %v165 = vunpack.c.l.b16 %v133
    %v166 = vunpack.c.l.b16 %v134
    %v167 = vunpack.c.l.b16 %v135
    %v168 = vunpack.c.l.b16 %v136
    %v169 = vunpack.c.l.b16 %v137
    %v170 = vunpack.c.l.b16 %v138
    %v171 = vunpack.c.l.b16 %v139
    %v172 = vunpack.c.l.b16 %v140
    %v173 = vunpack.c.l.b16 %v141
    %v174 = vunpack.c.l.b16 %v142
    %v175 = vunpack.c.l.b16 %v143
    %v176 = vunpack.c.l.b16 %v144
    %v177 = vunpack.c.l.b16 %v145
    %v178 = vunpack.c.l.b16 %v146
    %v179 = vunpack.c.l.b16 %v147
    %v180 = vpack.c.b16 %v165, %v164
    %v181 = vpack.c.b16 %v167, %v166
    %v182 = vpack.c.b16 %v169, %v168
    %v183 = vpack.c.b16 %v171, %v170
    %v184 = vpack.c.b16 %v173, %v172
    %v185 = vpack.c.b16 %v175, %v174
    %v186 = vpack.c.b16 %v177, %v176
    %v187 = vpack.c.b16 %v179, %v178
    %196 = vmatprep.subr.bf16.mxu0 0
    %197 = vmatpush1.bf16.msra.mxu0 %v180
    %198 = vmatprep.subr.bf16.mxu0 0
    %199 = vmatpush1.bf16.msra.mxu0 %v181
    %200 = vmatprep.subr.bf16.mxu0 0
    %201 = vmatpush1.bf16.msra.mxu0 %v182
    %202 = vmatprep.subr.bf16.mxu0 0
    %203 = vmatpush1.bf16.msra.mxu0 %v183
    %204 = vmatprep.subr.bf16.mxu0 0
    %205 = vmatpush1.bf16.msra.mxu0 %v184
    %206 = vmatprep.subr.bf16.mxu0 0
    %207 = vmatpush1.bf16.msra.mxu0 %v185
    %208 = vmatprep.subr.bf16.mxu0 0
    %209 = vmatpush1.bf16.msra.mxu0 %v186
    %210 = vmatprep.subr.bf16.mxu0 0
    %211 = vmatpush1.bf16.msra.mxu0 %v187
    %212 = vmatprep.subr.bf16.mxu0 0
    %213 = vmatpush1.bf16.msra.mxu0 0
    %214 = vmatprep.subr.bf16.mxu0 0
    %215 = vmatpush1.bf16.msra.mxu0 0
    %216 = vmatprep.subr.bf16.mxu0 0
    %217 = vmatpush1.bf16.msra.mxu0 0
    %218 = vmatprep.subr.bf16.mxu0 0
    %219 = vmatpush1.bf16.msra.mxu0 0
    %220 = vmatprep.subr.bf16.mxu0 0
    %221 = vmatpush1.bf16.msra.mxu0 0
    %222 = vmatprep.subr.bf16.mxu0 0
    %223 = vmatpush1.bf16.msra.mxu0 0
    %224 = vmatprep.subr.bf16.mxu0 0
    %225 = vmatpush1.bf16.msra.mxu0 0
    %226 = vmatprep.subr.bf16.mxu0 0
    %227 = vmatpush1.bf16.msra.mxu0 0
    %228 = vmatprep.mubr.bf16.mxu0 0
    %229 = vmatmul.mubr.bf16.gmra.mrb[0].mxu0 %v129
    %v230 = vpop.f32.mrb[0].mxu0
    %v231 = vadd.f32 0.0, %v230
    %v232 = vpop.f32.mrb[0].mxu0
    %v233 = vpop.f32.mrb[0].mxu0
    %v234 = vadd.f32 0.0, %v233
    %v235 = vpop.f32.mrb[0].mxu0
    %236 = vmatprep.mubr.bf16.mxu0 0
    %237 = vmatmul.mubr.bf16.gmra.mrb[0].mxu0 %v130
    %v238 = vpop.f32.mrb[0].mxu0
    %v239 = vadd.f32 0.0, %v238
    %v240 = vpop.f32.mrb[0].mxu0
    %v241 = vpop.f32.mrb[0].mxu0
    %v242 = vadd.f32 0.0, %v241
    %v243 = vpop.f32.mrb[0].mxu0
    %244 = vdwg.mxu0
    %v261 = vunpack.c.l.b16 %v89
    %v262 = vunpack.c.l.b16 %v90
    %v263 = vunpack.c.l.b16 %v91
    %v264 = vunpack.c.l.b16 %v92
    %v265 = vunpack.c.l.b16 %v93
    %v266 = vunpack.c.l.b16 %v94
    %v267 = vunpack.c.l.b16 %v95
    %v268 = vunpack.c.l.b16 %v96
    %v269 = vunpack.c.l.b16 %v97
    %v270 = vunpack.c.l.b16 %v98
    %v271 = vunpack.c.l.b16 %v99
    %v272 = vunpack.c.l.b16 %v100
    %v273 = vunpack.c.l.b16 %v101
    %v274 = vunpack.c.l.b16 %v102
    %v275 = vunpack.c.l.b16 %v103
    %v276 = vunpack.c.l.b16 %v104
    %v277 = vpack.c.b16 %v262, %v261
    %v278 = vpack.c.b16 %v264, %v263
    %v279 = vpack.c.b16 %v266, %v265
    %v280 = vpack.c.b16 %v268, %v267
    %v281 = vpack.c.b16 %v270, %v269
    %v282 = vpack.c.b16 %v272, %v271
    %v283 = vpack.c.b16 %v274, %v273
    %v284 = vpack.c.b16 %v276, %v275
    %293 = vmatprep.subr.bf16.mxu0 0
    %294 = vmatpush1.bf16.msra.mxu0 %v277
    %295 = vmatprep.subr.bf16.mxu0 0
    %296 = vmatpush1.bf16.msra.mxu0 %v278
    %297 = vmatprep.subr.bf16.mxu0 0
    %298 = vmatpush1.bf16.msra.mxu0 %v279
    %299 = vmatprep.subr.bf16.mxu0 0
    %300 = vmatpush1.bf16.msra.mxu0 %v280
    %301 = vmatprep.subr.bf16.mxu0 0
    %302 = vmatpush1.bf16.msra.mxu0 %v281
    %303 = vmatprep.subr.bf16.mxu0 0
    %304 = vmatpush1.bf16.msra.mxu0 %v282
    %305 = vmatprep.subr.bf16.mxu0 0
    %306 = vmatpush1.bf16.msra.mxu0 %v283
    %307 = vmatprep.subr.bf16.mxu0 0
    %308 = vmatpush1.bf16.msra.mxu0 %v284
    %309 = vmatprep.subr.bf16.mxu0 0
    %310 = vmatpush1.bf16.msra.mxu0 0
    %311 = vmatprep.subr.bf16.mxu0 0
    %312 = vmatpush1.bf16.msra.mxu0 0
    %313 = vmatprep.subr.bf16.mxu0 0
    %314 = vmatpush1.bf16.msra.mxu0 0
    %315 = vmatprep.subr.bf16.mxu0 0
    %316 = vmatpush1.bf16.msra.mxu0 0
    %317 = vmatprep.subr.bf16.mxu0 0
    %318 = vmatpush1.bf16.msra.mxu0 0
    %319 = vmatprep.subr.bf16.mxu0 0
    %320 = vmatpush1.bf16.msra.mxu0 0
    %321 = vmatprep.subr.bf16.mxu0 0
    %322 = vmatpush1.bf16.msra.mxu0 0
    %323 = vmatprep.subr.bf16.mxu0 0
    %324 = vmatpush1.bf16.msra.mxu0 0
    %325 = vmatprep.mubr.bf16.mxu0 0
    %326 = vmatmul.mubr.bf16.gmra.mrb[0].mxu0 %v87
    %v327 = vpop.f32.mrb[0].mxu0
    %v328 = vadd.f32 %v231, %v327
    %v329 = vpop.f32.mrb[0].mxu0
    %v330 = vpop.f32.mrb[0].mxu0
    %v331 = vadd.f32 %v234, %v330
    %v332 = vpop.f32.mrb[0].mxu0
    %333 = vmatprep.mubr.bf16.mxu0 0
    %334 = vmatmul.mubr.bf16.gmra.mrb[0].mxu0 %v88
    %v335 = vpop.f32.mrb[0].mxu0
    %v336 = vadd.f32 %v239, %v335
    %v337 = vpop.f32.mrb[0].mxu0
    %v338 = vpop.f32.mrb[0].mxu0
    %v339 = vadd.f32 %v242, %v338
    %v340 = vpop.f32.mrb[0].mxu0
    %341 = vdwg.mxu0
    %v342 = vld [vmem:[#allocation2 + $0x2] sm:$0xff]
    %v343 = vld [vmem:[#allocation2 + $0xa] sm:$0xff]
    %v344 = vld [vmem:[#allocation2 + $0x12] sm:$0xff]
    %v345 = vld [vmem:[#allocation2 + $0x1a] sm:$0xff]
    %346 = vset.pattern.permute.xlu0 2
    %347 = vperm.xlu0 %346, %v63
    %v348 = vpop.permute.xlu0 %347
    %349 = vset.pattern.permute.xlu0 2
    %350 = vperm.xlu0 %349, %v64
    %v351 = vpop.permute.xlu0 %350
    %352 = vset.pattern.permute.xlu0 2
    %353 = vperm.xlu0 %352, %v65
    %v354 = vpop.permute.xlu0 %353
    %355 = vset.pattern.permute.xlu0 2
    %356 = vperm.xlu0 %355, %v66
    %v357 = vpop.permute.xlu0 %356
    %vm358 = vcmp.eq.s32.totalorder %v348, 1
    %vm359 = vcmp.eq.s32.totalorder %v351, 1
    %vm360 = vcmp.eq.s32.totalorder %v354, 1
    %vm361 = vcmp.eq.s32.totalorder %v357, 1
    %v362 = vsel %vm358, %v342, 0.0
    %v363 = vsel %vm359, %v343, 0.0
    %v364 = vsel %vm360, %v344, 0.0
    %v365 = vsel %vm361, %v345, 0.0
    %v366 = vpack.c.bf16 %v363, %v362
    %v367 = vpack.c.bf16 %v365, %v364
    %s368 = scalar_lea.vmem [#allocation4], 128
    %v369 = vld [vmem:[%s368] sm:$0xf]
    %v370 = vld [vmem:[%s368 + $0x4] sm:$0xf]
    %v371 = vld [vmem:[%s368 + $0x8] sm:$0xf]
    %v372 = vld [vmem:[%s368 + $0xc] sm:$0xf]
    %v373 = vld [vmem:[%s368 + $0x10] sm:$0xf]
    %v374 = vld [vmem:[%s368 + $0x14] sm:$0xf]
    %v375 = vld [vmem:[%s368 + $0x18] sm:$0xf]
    %v376 = vld [vmem:[%s368 + $0x1c] sm:$0xf]
    %v377 = vld [vmem:[%s368 + $0x20] sm:$0xf]
    %v378 = vld [vmem:[%s368 + $0x24] sm:$0xf]
    %v379 = vld [vmem:[%s368 + $0x28] sm:$0xf]
    %v380 = vld [vmem:[%s368 + $0x2c] sm:$0xf]
    %v381 = vld [vmem:[%s368 + $0x30] sm:$0xf]
    %v382 = vld [vmem:[%s368 + $0x34] sm:$0xf]
    %v383 = vld [vmem:[%s368 + $0x38] sm:$0xf]
    %v384 = vld [vmem:[%s368 + $0x3c] sm:$0xf]
    %v401 = vunpack.c.l.b16 %v369
    %v402 = vunpack.c.l.b16 %v370
    %v403 = vunpack.c.l.b16 %v371
    %v404 = vunpack.c.l.b16 %v372
    %v405 = vunpack.c.l.b16 %v373
    %v406 = vunpack.c.l.b16 %v374
    %v407 = vunpack.c.l.b16 %v375
    %v408 = vunpack.c.l.b16 %v376
    %v409 = vunpack.c.l.b16 %v377
    %v410 = vunpack.c.l.b16 %v378
    %v411 = vunpack.c.l.b16 %v379
    %v412 = vunpack.c.l.b16 %v380
    %v413 = vunpack.c.l.b16 %v381
    %v414 = vunpack.c.l.b16 %v382
    %v415 = vunpack.c.l.b16 %v383
    %v416 = vunpack.c.l.b16 %v384
    %v417 = vpack.c.b16 %v402, %v401
    %v418 = vpack.c.b16 %v404, %v403
    %v419 = vpack.c.b16 %v406, %v405
    %v420 = vpack.c.b16 %v408, %v407
    %v421 = vpack.c.b16 %v410, %v409
    %v422 = vpack.c.b16 %v412, %v411
    %v423 = vpack.c.b16 %v414, %v413
    %v424 = vpack.c.b16 %v416, %v415
    %433 = vmatprep.subr.bf16.mxu0 0
    %434 = vmatpush1.bf16.msra.mxu0 %v417
    %435 = vmatprep.subr.bf16.mxu0 0
    %436 = vmatpush1.bf16.msra.mxu0 %v418
    %437 = vmatprep.subr.bf16.mxu0 0
    %438 = vmatpush1.bf16.msra.mxu0 %v419
    %439 = vmatprep.subr.bf16.mxu0 0
    %440 = vmatpush1.bf16.msra.mxu0 %v420
    %441 = vmatprep.subr.bf16.mxu0 0
    %442 = vmatpush1.bf16.msra.mxu0 %v421
    %443 = vmatprep.subr.bf16.mxu0 0
    %444 = vmatpush1.bf16.msra.mxu0 %v422
    %445 = vmatprep.subr.bf16.mxu0 0
    %446 = vmatpush1.bf16.msra.mxu0 %v423
    %447 = vmatprep.subr.bf16.mxu0 0
    %448 = vmatpush1.bf16.msra.mxu0 %v424
    %449 = vmatprep.subr.bf16.mxu0 0
    %450 = vmatpush1.bf16.msra.mxu0 0
    %451 = vmatprep.subr.bf16.mxu0 0
    %452 = vmatpush1.bf16.msra.mxu0 0
    %453 = vmatprep.subr.bf16.mxu0 0
    %454 = vmatpush1.bf16.msra.mxu0 0
    %455 = vmatprep.subr.bf16.mxu0 0
    %456 = vmatpush1.bf16.msra.mxu0 0
    %457 = vmatprep.subr.bf16.mxu0 0
    %458 = vmatpush1.bf16.msra.mxu0 0
    %459 = vmatprep.subr.bf16.mxu0 0
    %460 = vmatpush1.bf16.msra.mxu0 0
    %461 = vmatprep.subr.bf16.mxu0 0
    %462 = vmatpush1.bf16.msra.mxu0 0
    %463 = vmatprep.subr.bf16.mxu0 0
    %464 = vmatpush1.bf16.msra.mxu0 0
    %465 = vmatprep.mubr.bf16.mxu0 0
    %466 = vmatmul.mubr.bf16.gmra.mrb[0].mxu0 %v366
    %v467 = vpop.f32.mrb[0].mxu0
    %v468 = vadd.f32 0.0, %v467
    %v469 = vpop.f32.mrb[0].mxu0
    %v470 = vpop.f32.mrb[0].mxu0
    %v471 = vadd.f32 0.0, %v470
    %v472 = vpop.f32.mrb[0].mxu0
    %473 = vmatprep.mubr.bf16.mxu0 0
    %474 = vmatmul.mubr.bf16.gmra.mrb[0].mxu0 %v367
    %v475 = vpop.f32.mrb[0].mxu0
    %v476 = vadd.f32 0.0, %v475
    %v477 = vpop.f32.mrb[0].mxu0
    %v478 = vpop.f32.mrb[0].mxu0
    %v479 = vadd.f32 0.0, %v478
    %v480 = vpop.f32.mrb[0].mxu0
    %481 = vdwg.mxu0
    %v482 = vadd.f32 %v328, %v468
    %v483 = vadd.f32 %v331, %v471
    %v484 = vadd.f32 %v336, %v476
    %v485 = vadd.f32 %v339, %v479
    %v486 = vld [vmem:[#allocation2 + $0x3] sm:$0xff]
    %v487 = vld [vmem:[#allocation2 + $0xb] sm:$0xff]
    %v488 = vld [vmem:[#allocation2 + $0x13] sm:$0xff]
    %v489 = vld [vmem:[#allocation2 + $0x1b] sm:$0xff]
    %490 = vset.pattern.permute.xlu0 3
    %491 = vperm.xlu0 %490, %v63
    %v492 = vpop.permute.xlu0 %491
    %493 = vset.pattern.permute.xlu0 3
    %494 = vperm.xlu0 %493, %v64
    %v495 = vpop.permute.xlu0 %494
    %496 = vset.pattern.permute.xlu0 3
    %497 = vperm.xlu0 %496, %v65
    %v498 = vpop.permute.xlu0 %497
    %499 = vset.pattern.permute.xlu0 3
    %500 = vperm.xlu0 %499, %v66
    %v501 = vpop.permute.xlu0 %500
    %vm502 = vcmp.eq.s32.totalorder %v492, 1
    %vm503 = vcmp.eq.s32.totalorder %v495, 1
    %vm504 = vcmp.eq.s32.totalorder %v498, 1
    %vm505 = vcmp.eq.s32.totalorder %v501, 1
    %v506 = vsel %vm502, %v486, 0.0
    %v507 = vsel %vm503, %v487, 0.0
    %v508 = vsel %vm504, %v488, 0.0
    %v509 = vsel %vm505, %v489, 0.0
    %v510 = vpack.c.bf16 %v507, %v506
    %v511 = vpack.c.bf16 %v509, %v508
    %s512 = scalar_lea.vmem [#allocation4], 192
    %v513 = vld [vmem:[%s512] sm:$0xf]
    %v514 = vld [vmem:[%s512 + $0x4] sm:$0xf]
    %v515 = vld [vmem:[%s512 + $0x8] sm:$0xf]
    %v516 = vld [vmem:[%s512 + $0xc] sm:$0xf]
    %v517 = vld [vmem:[%s512 + $0x10] sm:$0xf]
    %v518 = vld [vmem:[%s512 + $0x14] sm:$0xf]
    %v519 = vld [vmem:[%s512 + $0x18] sm:$0xf]
    %v520 = vld [vmem:[%s512 + $0x1c] sm:$0xf]
    %v521 = vld [vmem:[%s512 + $0x20] sm:$0xf]
    %v522 = vld [vmem:[%s512 + $0x24] sm:$0xf]
    %v523 = vld [vmem:[%s512 + $0x28] sm:$0xf]
    %v524 = vld [vmem:[%s512 + $0x2c] sm:$0xf]
    %v525 = vld [vmem:[%s512 + $0x30] sm:$0xf]
    %v526 = vld [vmem:[%s512 + $0x34] sm:$0xf]
    %v527 = vld [vmem:[%s512 + $0x38] sm:$0xf]
    %v528 = vld [vmem:[%s512 + $0x3c] sm:$0xf]
    %v545 = vunpack.c.l.b16 %v513
    %v546 = vunpack.c.l.b16 %v514
    %v547 = vunpack.c.l.b16 %v515
    %v548 = vunpack.c.l.b16 %v516
    %v549 = vunpack.c.l.b16 %v517
    %v550 = vunpack.c.l.b16 %v518
    %v551 = vunpack.c.l.b16 %v519
    %v552 = vunpack.c.l.b16 %v520
    %v553 = vunpack.c.l.b16 %v521
    %v554 = vunpack.c.l.b16 %v522
    %v555 = vunpack.c.l.b16 %v523
    %v556 = vunpack.c.l.b16 %v524
    %v557 = vunpack.c.l.b16 %v525
    %v558 = vunpack.c.l.b16 %v526
    %v559 = vunpack.c.l.b16 %v527
    %v560 = vunpack.c.l.b16 %v528
    %v561 = vpack.c.b16 %v546, %v545
    %v562 = vpack.c.b16 %v548, %v547
    %v563 = vpack.c.b16 %v550, %v549
    %v564 = vpack.c.b16 %v552, %v551
    %v565 = vpack.c.b16 %v554, %v553
    %v566 = vpack.c.b16 %v556, %v555
    %v567 = vpack.c.b16 %v558, %v557
    %v568 = vpack.c.b16 %v560, %v559
    %577 = vmatprep.subr.bf16.mxu0 0
    %578 = vmatpush1.bf16.msra.mxu0 %v561
    %579 = vmatprep.subr.bf16.mxu0 0
    %580 = vmatpush1.bf16.msra.mxu0 %v562
    %581 = vmatprep.subr.bf16.mxu0 0
    %582 = vmatpush1.bf16.msra.mxu0 %v563
    %583 = vmatprep.subr.bf16.mxu0 0
    %584 = vmatpush1.bf16.msra.mxu0 %v564
    %585 = vmatprep.subr.bf16.mxu0 0
    %586 = vmatpush1.bf16.msra.mxu0 %v565
    %587 = vmatprep.subr.bf16.mxu0 0
    %588 = vmatpush1.bf16.msra.mxu0 %v566
    %589 = vmatprep.subr.bf16.mxu0 0
    %590 = vmatpush1.bf16.msra.mxu0 %v567
    %591 = vmatprep.subr.bf16.mxu0 0
    %592 = vmatpush1.bf16.msra.mxu0 %v568
    %593 = vmatprep.subr.bf16.mxu0 0
    %594 = vmatpush1.bf16.msra.mxu0 0
    %595 = vmatprep.subr.bf16.mxu0 0
    %596 = vmatpush1.bf16.msra.mxu0 0
    %597 = vmatprep.subr.bf16.mxu0 0
    %598 = vmatpush1.bf16.msra.mxu0 0
    %599 = vmatprep.subr.bf16.mxu0 0
    %600 = vmatpush1.bf16.msra.mxu0 0
    %601 = vmatprep.subr.bf16.mxu0 0
    %602 = vmatpush1.bf16.msra.mxu0 0
    %603 = vmatprep.subr.bf16.mxu0 0
    %604 = vmatpush1.bf16.msra.mxu0 0
    %605 = vmatprep.subr.bf16.mxu0 0
    %606 = vmatpush1.bf16.msra.mxu0 0
    %607 = vmatprep.subr.bf16.mxu0 0
    %608 = vmatpush1.bf16.msra.mxu0 0
    %609 = vmatprep.mubr.bf16.mxu0 0
    %610 = vmatmul.mubr.bf16.gmra.mrb[0].mxu0 %v510
    %v611 = vpop.f32.mrb[0].mxu0
    %v612 = vadd.f32 0.0, %v611
    %v613 = vpop.f32.mrb[0].mxu0
    %v614 = vpop.f32.mrb[0].mxu0
    %v615 = vadd.f32 0.0, %v614
    %v616 = vpop.f32.mrb[0].mxu0
    %617 = vmatprep.mubr.bf16.mxu0 0
    %618 = vmatmul.mubr.bf16.gmra.mrb[0].mxu0 %v511
    %v619 = vpop.f32.mrb[0].mxu0
    %v620 = vadd.f32 0.0, %v619
    %v621 = vpop.f32.mrb[0].mxu0
    %v622 = vpop.f32.mrb[0].mxu0
    %v623 = vadd.f32 0.0, %v622
    %v624 = vpop.f32.mrb[0].mxu0
    %625 = vdwg.mxu0
    %v626 = vadd.f32 %v482, %v612
    %v627 = vadd.f32 %v483, %v615
    %v628 = vadd.f32 %v484, %v620
    %v629 = vadd.f32 %v485, %v623
    %v630 = vld [vmem:[#allocation2 + $0x4] sm:$0xff]
    %v631 = vld [vmem:[#allocation2 + $0xc] sm:$0xff]
    %v632 = vld [vmem:[#allocation2 + $0x14] sm:$0xff]
    %v633 = vld [vmem:[#allocation2 + $0x1c] sm:$0xff]
    %634 = vset.pattern.permute.xlu0 4
    %635 = vperm.xlu0 %634, %v63
    %v636 = vpop.permute.xlu0 %635
    %637 = vset.pattern.permute.xlu0 4
    %638 = vperm.xlu0 %637, %v64
    %v639 = vpop.permute.xlu0 %638
    %640 = vset.pattern.permute.xlu0 4
    %641 = vperm.xlu0 %640, %v65
    %v642 = vpop.permute.xlu0 %641
    %643 = vset.pattern.permute.xlu0 4
    %644 = vperm.xlu0 %643, %v66
    %v645 = vpop.permute.xlu0 %644
    %vm646 = vcmp.eq.s32.totalorder %v636, 1
    %vm647 = vcmp.eq.s32.totalorder %v639, 1
    %vm648 = vcmp.eq.s32.totalorder %v642, 1
    %vm649 = vcmp.eq.s32.totalorder %v645, 1
    %v650 = vsel %vm646, %v630, 0.0
    %v651 = vsel %vm647, %v631, 0.0
    %v652 = vsel %vm648, %v632, 0.0
    %v653 = vsel %vm649, %v633, 0.0
    %v654 = vpack.c.bf16 %v651, %v650
    %v655 = vpack.c.bf16 %v653, %v652
    %s656 = scalar_lea.vmem [#allocation4], 256
    %v657 = vld [vmem:[%s656] sm:$0xf]
    %v658 = vld [vmem:[%s656 + $0x4] sm:$0xf]
    %v659 = vld [vmem:[%s656 + $0x8] sm:$0xf]
    %v660 = vld [vmem:[%s656 + $0xc] sm:$0xf]
    %v661 = vld [vmem:[%s656 + $0x10] sm:$0xf]
    %v662 = vld [vmem:[%s656 + $0x14] sm:$0xf]
    %v663 = vld [vmem:[%s656 + $0x18] sm:$0xf]
    %v664 = vld [vmem:[%s656 + $0x1c] sm:$0xf]
    %v665 = vld [vmem:[%s656 + $0x20] sm:$0xf]
    %v666 = vld [vmem:[%s656 + $0x24] sm:$0xf]
    %v667 = vld [vmem:[%s656 + $0x28] sm:$0xf]
    %v668 = vld [vmem:[%s656 + $0x2c] sm:$0xf]
    %v669 = vld [vmem:[%s656 + $0x30] sm:$0xf]
    %v670 = vld [vmem:[%s656 + $0x34] sm:$0xf]
    %v671 = vld [vmem:[%s656 + $0x38] sm:$0xf]
    %v672 = vld [vmem:[%s656 + $0x3c] sm:$0xf]
    %v689 = vunpack.c.l.b16 %v657
    %v690 = vunpack.c.l.b16 %v658
    %v691 = vunpack.c.l.b16 %v659
    %v692 = vunpack.c.l.b16 %v660
    %v693 = vunpack.c.l.b16 %v661
    %v694 = vunpack.c.l.b16 %v662
    %v695 = vunpack.c.l.b16 %v663
    %v696 = vunpack.c.l.b16 %v664
    %v697 = vunpack.c.l.b16 %v665
    %v698 = vunpack.c.l.b16 %v666
    %v699 = vunpack.c.l.b16 %v667
    %v700 = vunpack.c.l.b16 %v668
    %v701 = vunpack.c.l.b16 %v669
    %v702 = vunpack.c.l.b16 %v670
    %v703 = vunpack.c.l.b16 %v671
    %v704 = vunpack.c.l.b16 %v672
    %v705 = vpack.c.b16 %v690, %v689
    %v706 = vpack.c.b16 %v692, %v691
    %v707 = vpack.c.b16 %v694, %v693
    %v708 = vpack.c.b16 %v696, %v695
    %v709 = vpack.c.b16 %v698, %v697
    %v710 = vpack.c.b16 %v700, %v699
    %v711 = vpack.c.b16 %v702, %v701
    %v712 = vpack.c.b16 %v704, %v703
    %721 = vmatprep.subr.bf16.mxu0 0
    %722 = vmatpush1.bf16.msra.mxu0 %v705
    %723 = vmatprep.subr.bf16.mxu0 0
    %724 = vmatpush1.bf16.msra.mxu0 %v706
    %725 = vmatprep.subr.bf16.mxu0 0
    %726 = vmatpush1.bf16.msra.mxu0 %v707
    %727 = vmatprep.subr.bf16.mxu0 0
    %728 = vmatpush1.bf16.msra.mxu0 %v708
    %729 = vmatprep.subr.bf16.mxu0 0
    %730 = vmatpush1.bf16.msra.mxu0 %v709
    %731 = vmatprep.subr.bf16.mxu0 0
    %732 = vmatpush1.bf16.msra.mxu0 %v710
    %733 = vmatprep.subr.bf16.mxu0 0
    %734 = vmatpush1.bf16.msra.mxu0 %v711
    %735 = vmatprep.subr.bf16.mxu0 0
    %736 = vmatpush1.bf16.msra.mxu0 %v712
    %737 = vmatprep.subr.bf16.mxu0 0
    %738 = vmatpush1.bf16.msra.mxu0 0
    %739 = vmatprep.subr.bf16.mxu0 0
    %740 = vmatpush1.bf16.msra.mxu0 0
    %741 = vmatprep.subr.bf16.mxu0 0
    %742 = vmatpush1.bf16.msra.mxu0 0
    %743 = vmatprep.subr.bf16.mxu0 0
    %744 = vmatpush1.bf16.msra.mxu0 0
    %745 = vmatprep.subr.bf16.mxu0 0
    %746 = vmatpush1.bf16.msra.mxu0 0
    %747 = vmatprep.subr.bf16.mxu0 0
    %748 = vmatpush1.bf16.msra.mxu0 0
    %749 = vmatprep.subr.bf16.mxu0 0
    %750 = vmatpush1.bf16.msra.mxu0 0
    %751 = vmatprep.subr.bf16.mxu0 0
    %752 = vmatpush1.bf16.msra.mxu0 0
    %753 = vmatprep.mubr.bf16.mxu0 0
    %754 = vmatmul.mubr.bf16.gmra.mrb[0].mxu0 %v654
    %v755 = vpop.f32.mrb[0].mxu0
    %v756 = vadd.f32 0.0, %v755
    %v757 = vpop.f32.mrb[0].mxu0
    %v758 = vpop.f32.mrb[0].mxu0
    %v759 = vadd.f32 0.0, %v758
    %v760 = vpop.f32.mrb[0].mxu0
    %761 = vmatprep.mubr.bf16.mxu0 0
    %762 = vmatmul.mubr.bf16.gmra.mrb[0].mxu0 %v655
    %v763 = vpop.f32.mrb[0].mxu0
    %v764 = vadd.f32 0.0, %v763
    %v765 = vpop.f32.mrb[0].mxu0
    %v766 = vpop.f32.mrb[0].mxu0
    %v767 = vadd.f32 0.0, %v766
    %v768 = vpop.f32.mrb[0].mxu0
    %769 = vdwg.mxu0
    %v770 = vadd.f32 %v626, %v756
    %v771 = vadd.f32 %v627, %v759
    %v772 = vadd.f32 %v628, %v764
    %v773 = vadd.f32 %v629, %v767
    %v774 = vld [vmem:[#allocation2 + $0x5] sm:$0xff]
    %v775 = vld [vmem:[#allocation2 + $0xd] sm:$0xff]
    %v776 = vld [vmem:[#allocation2 + $0x15] sm:$0xff]
    %v777 = vld [vmem:[#allocation2 + $0x1d] sm:$0xff]
    %778 = vset.pattern.permute.xlu0 5
    %779 = vperm.xlu0 %778, %v63
    %v780 = vpop.permute.xlu0 %779
    %781 = vset.pattern.permute.xlu0 5
    %782 = vperm.xlu0 %781, %v64
    %v783 = vpop.permute.xlu0 %782
    %784 = vset.pattern.permute.xlu0 5
    %785 = vperm.xlu0 %784, %v65
    %v786 = vpop.permute.xlu0 %785
    %787 = vset.pattern.permute.xlu0 5
    %788 = vperm.xlu0 %787, %v66
    %v789 = vpop.permute.xlu0 %788
    %vm790 = vcmp.eq.s32.totalorder %v780, 1
    %vm791 = vcmp.eq.s32.totalorder %v783, 1
    %vm792 = vcmp.eq.s32.totalorder %v786, 1
    %vm793 = vcmp.eq.s32.totalorder %v789, 1
    %v794 = vsel %vm790, %v774, 0.0
    %v795 = vsel %vm791, %v775, 0.0
    %v796 = vsel %vm792, %v776, 0.0
    %v797 = vsel %vm793, %v777, 0.0
    %v798 = vpack.c.bf16 %v795, %v794
    %v799 = vpack.c.bf16 %v797, %v796
    %s800 = scalar_lea.vmem [#allocation4], 320
    %v801 = vld [vmem:[%s800] sm:$0xf]
    %v802 = vld [vmem:[%s800 + $0x4] sm:$0xf]
    %v803 = vld [vmem:[%s800 + $0x8] sm:$0xf]
    %v804 = vld [vmem:[%s800 + $0xc] sm:$0xf]
    %v805 = vld [vmem:[%s800 + $0x10] sm:$0xf]
    %v806 = vld [vmem:[%s800 + $0x14] sm:$0xf]
    %v807 = vld [vmem:[%s800 + $0x18] sm:$0xf]
    %v808 = vld [vmem:[%s800 + $0x1c] sm:$0xf]
    %v809 = vld [vmem:[%s800 + $0x20] sm:$0xf]
    %v810 = vld [vmem:[%s800 + $0x24] sm:$0xf]
    %v811 = vld [vmem:[%s800 + $0x28] sm:$0xf]
    %v812 = vld [vmem:[%s800 + $0x2c] sm:$0xf]
    %v813 = vld [vmem:[%s800 + $0x30] sm:$0xf]
    %v814 = vld [vmem:[%s800 + $0x34] sm:$0xf]
    %v815 = vld [vmem:[%s800 + $0x38] sm:$0xf]
    %v816 = vld [vmem:[%s800 + $0x3c] sm:$0xf]
    %v833 = vunpack.c.l.b16 %v801
    %v834 = vunpack.c.l.b16 %v802
    %v835 = vunpack.c.l.b16 %v803
    %v836 = vunpack.c.l.b16 %v804
    %v837 = vunpack.c.l.b16 %v805
    %v838 = vunpack.c.l.b16 %v806
    %v839 = vunpack.c.l.b16 %v807
    %v840 = vunpack.c.l.b16 %v808
    %v841 = vunpack.c.l.b16 %v809
    %v842 = vunpack.c.l.b16 %v810
    %v843 = vunpack.c.l.b16 %v811
    %v844 = vunpack.c.l.b16 %v812
    %v845 = vunpack.c.l.b16 %v813
    %v846 = vunpack.c.l.b16 %v814
    %v847 = vunpack.c.l.b16 %v815
    %v848 = vunpack.c.l.b16 %v816
    %v849 = vpack.c.b16 %v834, %v833
    %v850 = vpack.c.b16 %v836, %v835
    %v851 = vpack.c.b16 %v838, %v837
    %v852 = vpack.c.b16 %v840, %v839
    %v853 = vpack.c.b16 %v842, %v841
    %v854 = vpack.c.b16 %v844, %v843
    %v855 = vpack.c.b16 %v846, %v845
    %v856 = vpack.c.b16 %v848, %v847
    %865 = vmatprep.subr.bf16.mxu0 0
    %866 = vmatpush1.bf16.msra.mxu0 %v849
    %867 = vmatprep.subr.bf16.mxu0 0
    %868 = vmatpush1.bf16.msra.mxu0 %v850
    %869 = vmatprep.subr.bf16.mxu0 0
    %870 = vmatpush1.bf16.msra.mxu0 %v851
    %871 = vmatprep.subr.bf16.mxu0 0
    %872 = vmatpush1.bf16.msra.mxu0 %v852
    %873 = vmatprep.subr.bf16.mxu0 0
    %874 = vmatpush1.bf16.msra.mxu0 %v853
    %875 = vmatprep.subr.bf16.mxu0 0
    %876 = vmatpush1.bf16.msra.mxu0 %v854
    %877 = vmatprep.subr.bf16.mxu0 0
    %878 = vmatpush1.bf16.msra.mxu0 %v855
    %879 = vmatprep.subr.bf16.mxu0 0
    %880 = vmatpush1.bf16.msra.mxu0 %v856
    %881 = vmatprep.subr.bf16.mxu0 0
    %882 = vmatpush1.bf16.msra.mxu0 0
    %883 = vmatprep.subr.bf16.mxu0 0
    %884 = vmatpush1.bf16.msra.mxu0 0
    %885 = vmatprep.subr.bf16.mxu0 0
    %886 = vmatpush1.bf16.msra.mxu0 0
    %887 = vmatprep.subr.bf16.mxu0 0
    %888 = vmatpush1.bf16.msra.mxu0 0
    %889 = vmatprep.subr.bf16.mxu0 0
    %890 = vmatpush1.bf16.msra.mxu0 0
    %891 = vmatprep.subr.bf16.mxu0 0
    %892 = vmatpush1.bf16.msra.mxu0 0
    %893 = vmatprep.subr.bf16.mxu0 0
    %894 = vmatpush1.bf16.msra.mxu0 0
    %895 = vmatprep.subr.bf16.mxu0 0
    %896 = vmatpush1.bf16.msra.mxu0 0
    %897 = vmatprep.mubr.bf16.mxu0 0
    %898 = vmatmul.mubr.bf16.gmra.mrb[0].mxu0 %v798
    %v899 = vpop.f32.mrb[0].mxu0
    %v900 = vadd.f32 0.0, %v899
    %v901 = vpop.f32.mrb[0].mxu0
    %v902 = vpop.f32.mrb[0].mxu0
    %v903 = vadd.f32 0.0, %v902
    %v904 = vpop.f32.mrb[0].mxu0
    %905 = vmatprep.mubr.bf16.mxu0 0
    %906 = vmatmul.mubr.bf16.gmra.mrb[0].mxu0 %v799
    %v907 = vpop.f32.mrb[0].mxu0
    %v908 = vadd.f32 0.0, %v907
    %v909 = vpop.f32.mrb[0].mxu0
    %v910 = vpop.f32.mrb[0].mxu0
    %v911 = vadd.f32 0.0, %v910
    %v912 = vpop.f32.mrb[0].mxu0
    %913 = vdwg.mxu0
    %v914 = vadd.f32 %v770, %v900
    %v915 = vadd.f32 %v771, %v903
    %v916 = vadd.f32 %v772, %v908
    %v917 = vadd.f32 %v773, %v911
    %v918 = vld [vmem:[#allocation2 + $0x6] sm:$0xff]
    %v919 = vld [vmem:[#allocation2 + $0xe] sm:$0xff]
    %v920 = vld [vmem:[#allocation2 + $0x16] sm:$0xff]
    %v921 = vld [vmem:[#allocation2 + $0x1e] sm:$0xff]
    %922 = vset.pattern.permute.xlu0 6
    %923 = vperm.xlu0 %922, %v63
    %v924 = vpop.permute.xlu0 %923
    %925 = vset.pattern.permute.xlu0 6
    %926 = vperm.xlu0 %925, %v64
    %v927 = vpop.permute.xlu0 %926
    %928 = vset.pattern.permute.xlu0 6
    %929 = vperm.xlu0 %928, %v65
    %v930 = vpop.permute.xlu0 %929
    %931 = vset.pattern.permute.xlu0 6
    %932 = vperm.xlu0 %931, %v66
    %v933 = vpop.permute.xlu0 %932
    %vm934 = vcmp.eq.s32.totalorder %v924, 1
    %vm935 = vcmp.eq.s32.totalorder %v927, 1
    %vm936 = vcmp.eq.s32.totalorder %v930, 1
    %vm937 = vcmp.eq.s32.totalorder %v933, 1
    %v938 = vsel %vm934, %v918, 0.0
    %v939 = vsel %vm935, %v919, 0.0
    %v940 = vsel %vm936, %v920, 0.0
    %v941 = vsel %vm937, %v921, 0.0
    %v942 = vpack.c.bf16 %v939, %v938
    %v943 = vpack.c.bf16 %v941, %v940
    %s944 = scalar_lea.vmem [#allocation4], 384
    %v945 = vld [vmem:[%s944] sm:$0xf]
    %v946 = vld [vmem:[%s944 + $0x4] sm:$0xf]
    %v947 = vld [vmem:[%s944 + $0x8] sm:$0xf]
    %v948 = vld [vmem:[%s944 + $0xc] sm:$0xf]
    %v949 = vld [vmem:[%s944 + $0x10] sm:$0xf]
    %v950 = vld [vmem:[%s944 + $0x14] sm:$0xf]
    %v951 = vld [vmem:[%s944 + $0x18] sm:$0xf]
    %v952 = vld [vmem:[%s944 + $0x1c] sm:$0xf]
    %v953 = vld [vmem:[%s944 + $0x20] sm:$0xf]
    %v954 = vld [vmem:[%s944 + $0x24] sm:$0xf]
    %v955 = vld [vmem:[%s944 + $0x28] sm:$0xf]
    %v956 = vld [vmem:[%s944 + $0x2c] sm:$0xf]
    %v957 = vld [vmem:[%s944 + $0x30] sm:$0xf]
    %v958 = vld [vmem:[%s944 + $0x34] sm:$0xf]
    %v959 = vld [vmem:[%s944 + $0x38] sm:$0xf]
    %v960 = vld [vmem:[%s944 + $0x3c] sm:$0xf]
    %v977 = vunpack.c.l.b16 %v945
    %v978 = vunpack.c.l.b16 %v946
    %v979 = vunpack.c.l.b16 %v947
    %v980 = vunpack.c.l.b16 %v948
    %v981 = vunpack.c.l.b16 %v949
    %v982 = vunpack.c.l.b16 %v950
    %v983 = vunpack.c.l.b16 %v951
    %v984 = vunpack.c.l.b16 %v952
    %v985 = vunpack.c.l.b16 %v953
    %v986 = vunpack.c.l.b16 %v954
    %v987 = vunpack.c.l.b16 %v955
    %v988 = vunpack.c.l.b16 %v956
    %v989 = vunpack.c.l.b16 %v957
    %v990 = vunpack.c.l.b16 %v958
    %v991 = vunpack.c.l.b16 %v959
    %v992 = vunpack.c.l.b16 %v960
    %v993 = vpack.c.b16 %v978, %v977
    %v994 = vpack.c.b16 %v980, %v979
    %v995 = vpack.c.b16 %v982, %v981
    %v996 = vpack.c.b16 %v984, %v983
    %v997 = vpack.c.b16 %v986, %v985
    %v998 = vpack.c.b16 %v988, %v987
    %v999 = vpack.c.b16 %v990, %v989
    %v1000 = vpack.c.b16 %v992, %v991
    %1009 = vmatprep.subr.bf16.mxu0 0
    %1010 = vmatpush1.bf16.msra.mxu0 %v993
    %1011 = vmatprep.subr.bf16.mxu0 0
    %1012 = vmatpush1.bf16.msra.mxu0 %v994
    %1013 = vmatprep.subr.bf16.mxu0 0
    %1014 = vmatpush1.bf16.msra.mxu0 %v995
    %1015 = vmatprep.subr.bf16.mxu0 0
    %1016 = vmatpush1.bf16.msra.mxu0 %v996
    %1017 = vmatprep.subr.bf16.mxu0 0
    %1018 = vmatpush1.bf16.msra.mxu0 %v997
    %1019 = vmatprep.subr.bf16.mxu0 0
    %1020 = vmatpush1.bf16.msra.mxu0 %v998
    %1021 = vmatprep.subr.bf16.mxu0 0
    %1022 = vmatpush1.bf16.msra.mxu0 %v999
    %1023 = vmatprep.subr.bf16.mxu0 0
    %1024 = vmatpush1.bf16.msra.mxu0 %v1000
    %1025 = vmatprep.subr.bf16.mxu0 0
    %1026 = vmatpush1.bf16.msra.mxu0 0
    %1027 = vmatprep.subr.bf16.mxu0 0
    %1028 = vmatpush1.bf16.msra.mxu0 0
    %1029 = vmatprep.subr.bf16.mxu0 0
    %1030 = vmatpush1.bf16.msra.mxu0 0
    %1031 = vmatprep.subr.bf16.mxu0 0
    %1032 = vmatpush1.bf16.msra.mxu0 0
    %1033 = vmatprep.subr.bf16.mxu0 0
    %1034 = vmatpush1.bf16.msra.mxu0 0
    %1035 = vmatprep.subr.bf16.mxu0 0
    %1036 = vmatpush1.bf16.msra.mxu0 0
    %1037 = vmatprep.subr.bf16.mxu0 0
    %1038 = vmatpush1.bf16.msra.mxu0 0
    %1039 = vmatprep.subr.bf16.mxu0 0
    %1040 = vmatpush1.bf16.msra.mxu0 0
    %1041 = vmatprep.mubr.bf16.mxu0 0
    %1042 = vmatmul.mubr.bf16.gmra.mrb[0].mxu0 %v942
    %v1043 = vpop.f32.mrb[0].mxu0
    %v1044 = vadd.f32 0.0, %v1043
    %v1045 = vpop.f32.mrb[0].mxu0
    %v1046 = vpop.f32.mrb[0].mxu0
    %v1047 = vadd.f32 0.0, %v1046
    %v1048 = vpop.f32.mrb[0].mxu0
    %1049 = vmatprep.mubr.bf16.mxu0 0
    %1050 = vmatmul.mubr.bf16.gmra.mrb[0].mxu0 %v943
    %v1051 = vpop.f32.mrb[0].mxu0
    %v1052 = vadd.f32 0.0, %v1051
    %v1053 = vpop.f32.mrb[0].mxu0
    %v1054 = vpop.f32.mrb[0].mxu0
    %v1055 = vadd.f32 0.0, %v1054
    %v1056 = vpop.f32.mrb[0].mxu0
    %1057 = vdwg.mxu0
    %v1058 = vadd.f32 %v914, %v1044
    %v1059 = vadd.f32 %v915, %v1047
    %v1060 = vadd.f32 %v916, %v1052
    %v1061 = vadd.f32 %v917, %v1055
    %v1062 = vld [vmem:[#allocation2 + $0x7] sm:$0xff]
    %v1063 = vld [vmem:[#allocation2 + $0xf] sm:$0xff]
    %v1064 = vld [vmem:[#allocation2 + $0x17] sm:$0xff]
    %v1065 = vld [vmem:[#allocation2 + $0x1f] sm:$0xff]
    %1066 = vset.pattern.permute.xlu0 7
    %1067 = vperm.xlu0 %1066, %v63
    %v1068 = vpop.permute.xlu0 %1067
    %1069 = vset.pattern.permute.xlu0 7
    %1070 = vperm.xlu0 %1069, %v64
    %v1071 = vpop.permute.xlu0 %1070
    %1072 = vset.pattern.permute.xlu0 7
    %1073 = vperm.xlu0 %1072, %v65
    %v1074 = vpop.permute.xlu0 %1073
    %1075 = vset.pattern.permute.xlu0 7
    %1076 = vperm.xlu0 %1075, %v66
    %v1077 = vpop.permute.xlu0 %1076
    %vm1078 = vcmp.eq.s32.totalorder %v1068, 1
    %vm1079 = vcmp.eq.s32.totalorder %v1071, 1
    %vm1080 = vcmp.eq.s32.totalorder %v1074, 1
    %vm1081 = vcmp.eq.s32.totalorder %v1077, 1
    %v1082 = vsel %vm1078, %v1062, 0.0
    %v1083 = vsel %vm1079, %v1063, 0.0
    %v1084 = vsel %vm1080, %v1064, 0.0
    %v1085 = vsel %vm1081, %v1065, 0.0
    %v1086 = vpack.c.bf16 %v1083, %v1082
    %v1087 = vpack.c.bf16 %v1085, %v1084
    %s1088 = scalar_lea.vmem [#allocation4], 448
    %v1089 = vld [vmem:[%s1088] sm:$0xf]
    %v1090 = vld [vmem:[%s1088 + $0x4] sm:$0xf]
    %v1091 = vld [vmem:[%s1088 + $0x8] sm:$0xf]
    %v1092 = vld [vmem:[%s1088 + $0xc] sm:$0xf]
    %v1093 = vld [vmem:[%s1088 + $0x10] sm:$0xf]
    %v1094 = vld [vmem:[%s1088 + $0x14] sm:$0xf]
    %v1095 = vld [vmem:[%s1088 + $0x18] sm:$0xf]
    %v1096 = vld [vmem:[%s1088 + $0x1c] sm:$0xf]
    %v1097 = vld [vmem:[%s1088 + $0x20] sm:$0xf]
    %v1098 = vld [vmem:[%s1088 + $0x24] sm:$0xf]
    %v1099 = vld [vmem:[%s1088 + $0x28] sm:$0xf]
    %v1100 = vld [vmem:[%s1088 + $0x2c] sm:$0xf]
    %v1101 = vld [vmem:[%s1088 + $0x30] sm:$0xf]
    %v1102 = vld [vmem:[%s1088 + $0x34] sm:$0xf]
    %v1103 = vld [vmem:[%s1088 + $0x38] sm:$0xf]
    %v1104 = vld [vmem:[%s1088 + $0x3c] sm:$0xf]
    %v1121 = vunpack.c.l.b16 %v1089
    %v1122 = vunpack.c.l.b16 %v1090
    %v1123 = vunpack.c.l.b16 %v1091
    %v1124 = vunpack.c.l.b16 %v1092
    %v1125 = vunpack.c.l.b16 %v1093
    %v1126 = vunpack.c.l.b16 %v1094
    %v1127 = vunpack.c.l.b16 %v1095
    %v1128 = vunpack.c.l.b16 %v1096
    %v1129 = vunpack.c.l.b16 %v1097
    %v1130 = vunpack.c.l.b16 %v1098
    %v1131 = vunpack.c.l.b16 %v1099
    %v1132 = vunpack.c.l.b16 %v1100
    %v1133 = vunpack.c.l.b16 %v1101
    %v1134 = vunpack.c.l.b16 %v1102
    %v1135 = vunpack.c.l.b16 %v1103
    %v1136 = vunpack.c.l.b16 %v1104
    %v1137 = vpack.c.b16 %v1122, %v1121
    %v1138 = vpack.c.b16 %v1124, %v1123
    %v1139 = vpack.c.b16 %v1126, %v1125
    %v1140 = vpack.c.b16 %v1128, %v1127
    %v1141 = vpack.c.b16 %v1130, %v1129
    %v1142 = vpack.c.b16 %v1132, %v1131
    %v1143 = vpack.c.b16 %v1134, %v1133
    %v1144 = vpack.c.b16 %v1136, %v1135
    %1153 = vmatprep.subr.bf16.mxu0 0
    %1154 = vmatpush1.bf16.msra.mxu0 %v1137
    %1155 = vmatprep.subr.bf16.mxu0 0
    %1156 = vmatpush1.bf16.msra.mxu0 %v1138
    %1157 = vmatprep.subr.bf16.mxu0 0
    %1158 = vmatpush1.bf16.msra.mxu0 %v1139
    %1159 = vmatprep.subr.bf16.mxu0 0
    %1160 = vmatpush1.bf16.msra.mxu0 %v1140
    %1161 = vmatprep.subr.bf16.mxu0 0
    %1162 = vmatpush1.bf16.msra.mxu0 %v1141
    %1163 = vmatprep.subr.bf16.mxu0 0
    %1164 = vmatpush1.bf16.msra.mxu0 %v1142
    %1165 = vmatprep.subr.bf16.mxu0 0
    %1166 = vmatpush1.bf16.msra.mxu0 %v1143
    %1167 = vmatprep.subr.bf16.mxu0 0
    %1168 = vmatpush1.bf16.msra.mxu0 %v1144
    %1169 = vmatprep.subr.bf16.mxu0 0
    %1170 = vmatpush1.bf16.msra.mxu0 0
    %1171 = vmatprep.subr.bf16.mxu0 0
    %1172 = vmatpush1.bf16.msra.mxu0 0
    %1173 = vmatprep.subr.bf16.mxu0 0
    %1174 = vmatpush1.bf16.msra.mxu0 0
    %1175 = vmatprep.subr.bf16.mxu0 0
    %1176 = vmatpush1.bf16.msra.mxu0 0
    %1177 = vmatprep.subr.bf16.mxu0 0
    %1178 = vmatpush1.bf16.msra.mxu0 0
    %1179 = vmatprep.subr.bf16.mxu0 0
    %1180 = vmatpush1.bf16.msra.mxu0 0
    %1181 = vmatprep.subr.bf16.mxu0 0
    %1182 = vmatpush1.bf16.msra.mxu0 0
    %1183 = vmatprep.subr.bf16.mxu0 0
    %1184 = vmatpush1.bf16.msra.mxu0 0
    %1185 = vmatprep.mubr.bf16.mxu0 0
    %1186 = vmatmul.mubr.bf16.gmra.mrb[0].mxu0 %v1086
    %v1187 = vpop.f32.mrb[0].mxu0
    %v1188 = vadd.f32 0.0, %v1187
    %v1189 = vpop.f32.mrb[0].mxu0
    %v1190 = vpop.f32.mrb[0].mxu0
    %v1191 = vadd.f32 0.0, %v1190
    %v1192 = vpop.f32.mrb[0].mxu0
    %1193 = vmatprep.mubr.bf16.mxu0 0
    %1194 = vmatmul.mubr.bf16.gmra.mrb[0].mxu0 %v1087
    %v1195 = vpop.f32.mrb[0].mxu0
    %v1196 = vadd.f32 0.0, %v1195
    %v1197 = vpop.f32.mrb[0].mxu0
    %v1198 = vpop.f32.mrb[0].mxu0
    %v1199 = vadd.f32 0.0, %v1198
    %v1200 = vpop.f32.mrb[0].mxu0
    %1201 = vdwg.mxu0
    %v1202 = vadd.f32 %v1058, %v1188
    %v1203 = vadd.f32 %v1059, %v1191
    %v1204 = vadd.f32 %v1060, %v1196
    %v1205 = vadd.f32 %v1061, %v1199
    %v1206 = vld [vmem:[#allocation2 + $0x8] sm:$0xff]
    %v1207 = vld [vmem:[#allocation2 + $0x10] sm:$0xff]
    %v1208 = vld [vmem:[#allocation2 + $0x18] sm:$0xff]
    %v1209 = vld [vmem:[#allocation2 + $0x20] sm:$0xff]
    %1210 = vset.pattern.permute.xlu0 8
    %1211 = vperm.xlu0 %1210, %v63
    %v1212 = vpop.permute.xlu0 %1211
    %1213 = vset.pattern.permute.xlu0 8
    %1214 = vperm.xlu0 %1213, %v64
    %v1215 = vpop.permute.xlu0 %1214
    %1216 = vset.pattern.permute.xlu0 8
    %1217 = vperm.xlu0 %1216, %v65
    %v1218 = vpop.permute.xlu0 %1217
    %1219 = vset.pattern.permute.xlu0 8
    %1220 = vperm.xlu0 %1219, %v66
    %v1221 = vpop.permute.xlu0 %1220
    %vm1222 = vcmp.eq.s32.totalorder %v1212, 1
    %vm1223 = vcmp.eq.s32.totalorder %v1215, 1
    %vm1224 = vcmp.eq.s32.totalorder %v1218, 1
    %vm1225 = vcmp.eq.s32.totalorder %v1221, 1
    %v1226 = vsel %vm1222, %v1206, 0.0
    %v1227 = vsel %vm1223, %v1207, 0.0
    %v1228 = vsel %vm1224, %v1208, 0.0
    %v1229 = vsel %vm1225, %v1209, 0.0
    %v1230 = vpack.c.bf16 %v1227, %v1226
    %v1231 = vpack.c.bf16 %v1229, %v1228
    %s1232 = scalar_lea.vmem [#allocation4], 512
    %v1233 = vld [vmem:[%s1232] sm:$0xf]
    %v1234 = vld [vmem:[%s1232 + $0x4] sm:$0xf]
    %v1235 = vld [vmem:[%s1232 + $0x8] sm:$0xf]
    %v1236 = vld [vmem:[%s1232 + $0xc] sm:$0xf]
    %v1237 = vld [vmem:[%s1232 + $0x10] sm:$0xf]
    %v1238 = vld [vmem:[%s1232 + $0x14] sm:$0xf]
    %v1239 = vld [vmem:[%s1232 + $0x18] sm:$0xf]
    %v1240 = vld [vmem:[%s1232 + $0x1c] sm:$0xf]
    %v1241 = vld [vmem:[%s1232 + $0x20] sm:$0xf]
    %v1242 = vld [vmem:[%s1232 + $0x24] sm:$0xf]
    %v1243 = vld [vmem:[%s1232 + $0x28] sm:$0xf]
    %v1244 = vld [vmem:[%s1232 + $0x2c] sm:$0xf]
    %v1245 = vld [vmem:[%s1232 + $0x30] sm:$0xf]
    %v1246 = vld [vmem:[%s1232 + $0x34] sm:$0xf]
    %v1247 = vld [vmem:[%s1232 + $0x38] sm:$0xf]
    %v1248 = vld [vmem:[%s1232 + $0x3c] sm:$0xf]
    %v1265 = vunpack.c.l.b16 %v1233
    %v1266 = vunpack.c.l.b16 %v1234
    %v1267 = vunpack.c.l.b16 %v1235
    %v1268 = vunpack.c.l.b16 %v1236
    %v1269 = vunpack.c.l.b16 %v1237
    %v1270 = vunpack.c.l.b16 %v1238
    %v1271 = vunpack.c.l.b16 %v1239
    %v1272 = vunpack.c.l.b16 %v1240
    %v1273 = vunpack.c.l.b16 %v1241
    %v1274 = vunpack.c.l.b16 %v1242
    %v1275 = vunpack.c.l.b16 %v1243
    %v1276 = vunpack.c.l.b16 %v1244
    %v1277 = vunpack.c.l.b16 %v1245
    %v1278 = vunpack.c.l.b16 %v1246
    %v1279 = vunpack.c.l.b16 %v1247
    %v1280 = vunpack.c.l.b16 %v1248
    %v1281 = vpack.c.b16 %v1266, %v1265
    %v1282 = vpack.c.b16 %v1268, %v1267
    %v1283 = vpack.c.b16 %v1270, %v1269
    %v1284 = vpack.c.b16 %v1272, %v1271
    %v1285 = vpack.c.b16 %v1274, %v1273
    %v1286 = vpack.c.b16 %v1276, %v1275
    %v1287 = vpack.c.b16 %v1278, %v1277
    %v1288 = vpack.c.b16 %v1280, %v1279
    %1297 = vmatprep.subr.bf16.mxu0 0
    %1298 = vmatpush1.bf16.msra.mxu0 %v1281
    %1299 = vmatprep.subr.bf16.mxu0 0
    %1300 = vmatpush1.bf16.msra.mxu0 %v1282
    %1301 = vmatprep.subr.bf16.mxu0 0
    %1302 = vmatpush1.bf16.msra.mxu0 %v1283
    %1303 = vmatprep.subr.bf16.mxu0 0
    %1304 = vmatpush1.bf16.msra.mxu0 %v1284
    %1305 = vmatprep.subr.bf16.mxu0 0
    %1306 = vmatpush1.bf16.msra.mxu0 %v1285
    %1307 = vmatprep.subr.bf16.mxu0 0
    %1308 = vmatpush1.bf16.msra.mxu0 %v1286
    %1309 = vmatprep.subr.bf16.mxu0 0
    %1310 = vmatpush1.bf16.msra.mxu0 %v1287
    %1311 = vmatprep.subr.bf16.mxu0 0
    %1312 = vmatpush1.bf16.msra.mxu0 %v1288
    %1313 = vmatprep.subr.bf16.mxu0 0
    %1314 = vmatpush1.bf16.msra.mxu0 0
    %1315 = vmatprep.subr.bf16.mxu0 0
    %1316 = vmatpush1.bf16.msra.mxu0 0
    %1317 = vmatprep.subr.bf16.mxu0 0
    %1318 = vmatpush1.bf16.msra.mxu0 0
    %1319 = vmatprep.subr.bf16.mxu0 0
    %1320 = vmatpush1.bf16.msra.mxu0 0
    %1321 = vmatprep.subr.bf16.mxu0 0
    %1322 = vmatpush1.bf16.msra.mxu0 0
    %1323 = vmatprep.subr.bf16.mxu0 0
    %1324 = vmatpush1.bf16.msra.mxu0 0
    %1325 = vmatprep.subr.bf16.mxu0 0
    %1326 = vmatpush1.bf16.msra.mxu0 0
    %1327 = vmatprep.subr.bf16.mxu0 0
    %1328 = vmatpush1.bf16.msra.mxu0 0
    %1329 = vmatprep.mubr.bf16.mxu0 0
    %1330 = vmatmul.mubr.bf16.gmra.mrb[0].mxu0 %v1230
    %v1331 = vpop.f32.mrb[0].mxu0
    %v1332 = vadd.f32 0.0, %v1331
    %v1333 = vpop.f32.mrb[0].mxu0
    %v1334 = vpop.f32.mrb[0].mxu0
    %v1335 = vadd.f32 0.0, %v1334
    %v1336 = vpop.f32.mrb[0].mxu0
    %1337 = vmatprep.mubr.bf16.mxu0 0
    %1338 = vmatmul.mubr.bf16.gmra.mrb[0].mxu0 %v1231
    %v1339 = vpop.f32.mrb[0].mxu0
    %v1340 = vadd.f32 0.0, %v1339
    %v1341 = vpop.f32.mrb[0].mxu0
    %v1342 = vpop.f32.mrb[0].mxu0
    %v1343 = vadd.f32 0.0, %v1342
    %v1344 = vpop.f32.mrb[0].mxu0
    %1345 = vdwg.mxu0
    %v1346 = vadd.f32 %v1202, %v1332
    %v1347 = vadd.f32 %v1203, %v1335
    %v1348 = vadd.f32 %v1204, %v1340
    %v1349 = vadd.f32 %v1205, %v1343
    %v1350 = vld [vmem:[#allocation2 + $0x9] sm:$0xff]
    %v1351 = vld [vmem:[#allocation2 + $0x11] sm:$0xff]
    %v1352 = vld [vmem:[#allocation2 + $0x19] sm:$0xff]
    %v1353 = vld [vmem:[#allocation2 + $0x21] sm:$0xff]
    %1354 = vset.pattern.permute.xlu0 9
    %1355 = vperm.xlu0 %1354, %v63
    %v1356 = vpop.permute.xlu0 %1355
    %1357 = vset.pattern.permute.xlu0 9
    %1358 = vperm.xlu0 %1357, %v64
    %v1359 = vpop.permute.xlu0 %1358
    %1360 = vset.pattern.permute.xlu0 9
    %1361 = vperm.xlu0 %1360, %v65
    %v1362 = vpop.permute.xlu0 %1361
    %1363 = vset.pattern.permute.xlu0 9
    %1364 = vperm.xlu0 %1363, %v66
    %v1365 = vpop.permute.xlu0 %1364
    %vm1366 = vcmp.eq.s32.totalorder %v1356, 1
    %vm1367 = vcmp.eq.s32.totalorder %v1359, 1
    %vm1368 = vcmp.eq.s32.totalorder %v1362, 1
    %vm1369 = vcmp.eq.s32.totalorder %v1365, 1
    %v1370 = vsel %vm1366, %v1350, 0.0
    %v1371 = vsel %vm1367, %v1351, 0.0
    %v1372 = vsel %vm1368, %v1352, 0.0
    %v1373 = vsel %vm1369, %v1353, 0.0
    %v1374 = vpack.c.bf16 %v1371, %v1370
    %v1375 = vpack.c.bf16 %v1373, %v1372
    %s1376 = scalar_lea.vmem [#allocation4], 576
    %v1377 = vld [vmem:[%s1376] sm:$0xf]
    %v1378 = vld [vmem:[%s1376 + $0x4] sm:$0xf]
    %v1379 = vld [vmem:[%s1376 + $0x8] sm:$0xf]
    %v1380 = vld [vmem:[%s1376 + $0xc] sm:$0xf]
    %v1381 = vld [vmem:[%s1376 + $0x10] sm:$0xf]
    %v1382 = vld [vmem:[%s1376 + $0x14] sm:$0xf]
    %v1383 = vld [vmem:[%s1376 + $0x18] sm:$0xf]
    %v1384 = vld [vmem:[%s1376 + $0x1c] sm:$0xf]
    %v1385 = vld [vmem:[%s1376 + $0x20] sm:$0xf]
    %v1386 = vld [vmem:[%s1376 + $0x24] sm:$0xf]
    %v1387 = vld [vmem:[%s1376 + $0x28] sm:$0xf]
    %v1388 = vld [vmem:[%s1376 + $0x2c] sm:$0xf]
    %v1389 = vld [vmem:[%s1376 + $0x30] sm:$0xf]
    %v1390 = vld [vmem:[%s1376 + $0x34] sm:$0xf]
    %v1391 = vld [vmem:[%s1376 + $0x38] sm:$0xf]
    %v1392 = vld [vmem:[%s1376 + $0x3c] sm:$0xf]
    %v1409 = vunpack.c.l.b16 %v1377
    %v1410 = vunpack.c.l.b16 %v1378
    %v1411 = vunpack.c.l.b16 %v1379
    %v1412 = vunpack.c.l.b16 %v1380
    %v1413 = vunpack.c.l.b16 %v1381
    %v1414 = vunpack.c.l.b16 %v1382
    %v1415 = vunpack.c.l.b16 %v1383
    %v1416 = vunpack.c.l.b16 %v1384
    %v1417 = vunpack.c.l.b16 %v1385
    %v1418 = vunpack.c.l.b16 %v1386
    %v1419 = vunpack.c.l.b16 %v1387
    %v1420 = vunpack.c.l.b16 %v1388
    %v1421 = vunpack.c.l.b16 %v1389
    %v1422 = vunpack.c.l.b16 %v1390
    %v1423 = vunpack.c.l.b16 %v1391
    %v1424 = vunpack.c.l.b16 %v1392
    %v1425 = vpack.c.b16 %v1410, %v1409
    %v1426 = vpack.c.b16 %v1412, %v1411
    %v1427 = vpack.c.b16 %v1414, %v1413
    %v1428 = vpack.c.b16 %v1416, %v1415
    %v1429 = vpack.c.b16 %v1418, %v1417
    %v1430 = vpack.c.b16 %v1420, %v1419
    %v1431 = vpack.c.b16 %v1422, %v1421
    %v1432 = vpack.c.b16 %v1424, %v1423
    %1441 = vmatprep.subr.bf16.mxu0 0
    %1442 = vmatpush1.bf16.msra.mxu0 %v1425
    %1443 = vmatprep.subr.bf16.mxu0 0
    %1444 = vmatpush1.bf16.msra.mxu0 %v1426
    %1445 = vmatprep.subr.bf16.mxu0 0
    %1446 = vmatpush1.bf16.msra.mxu0 %v1427
    %1447 = vmatprep.subr.bf16.mxu0 0
    %1448 = vmatpush1.bf16.msra.mxu0 %v1428
    %1449 = vmatprep.subr.bf16.mxu0 0
    %1450 = vmatpush1.bf16.msra.mxu0 %v1429
    %1451 = vmatprep.subr.bf16.mxu0 0
    %1452 = vmatpush1.bf16.msra.mxu0 %v1430
    %1453 = vmatprep.subr.bf16.mxu0 0
    %1454 = vmatpush1.bf16.msra.mxu0 %v1431
    %1455 = vmatprep.subr.bf16.mxu0 0
    %1456 = vmatpush1.bf16.msra.mxu0 %v1432
    %1457 = vmatprep.subr.bf16.mxu0 0
    %1458 = vmatpush1.bf16.msra.mxu0 0
    %1459 = vmatprep.subr.bf16.mxu0 0
    %1460 = vmatpush1.bf16.msra.mxu0 0
    %1461 = vmatprep.subr.bf16.mxu0 0
    %1462 = vmatpush1.bf16.msra.mxu0 0
    %1463 = vmatprep.subr.bf16.mxu0 0
    %1464 = vmatpush1.bf16.msra.mxu0 0
    %1465 = vmatprep.subr.bf16.mxu0 0
    %1466 = vmatpush1.bf16.msra.mxu0 0
    %1467 = vmatprep.subr.bf16.mxu0 0
    %1468 = vmatpush1.bf16.msra.mxu0 0
    %1469 = vmatprep.subr.bf16.mxu0 0
    %1470 = vmatpush1.bf16.msra.mxu0 0
    %1471 = vmatprep.subr.bf16.mxu0 0
    %1472 = vmatpush1.bf16.msra.mxu0 0
    %1473 = vmatprep.mubr.bf16.mxu0 0
    %1474 = vmatmul.mubr.bf16.gmra.mrb[0].mxu0 %v1374
    %v1475 = vpop.f32.mrb[0].mxu0
    %v1476 = vadd.f32 0.0, %v1475
    %v1477 = vpop.f32.mrb[0].mxu0
    %v1478 = vpop.f32.mrb[0].mxu0
    %v1479 = vadd.f32 0.0, %v1478
    %v1480 = vpop.f32.mrb[0].mxu0
    %1481 = vmatprep.mubr.bf16.mxu0 0
    %1482 = vmatmul.mubr.bf16.gmra.mrb[0].mxu0 %v1375
    %v1483 = vpop.f32.mrb[0].mxu0
    %v1484 = vadd.f32 0.0, %v1483
    %v1485 = vpop.f32.mrb[0].mxu0
    %v1486 = vpop.f32.mrb[0].mxu0
    %v1487 = vadd.f32 0.0, %v1486
    %v1488 = vpop.f32.mrb[0].mxu0
    %1489 = vdwg.mxu0
    %v1490 = vadd.f32 %v1346, %v1476
    %v1491 = vadd.f32 %v1347, %v1479
    %v1492 = vadd.f32 %v1348, %v1484
    %v1493 = vadd.f32 %v1349, %v1487
    %v1494 = vld [vmem:[#allocation2 + $0xa] sm:$0xff]
    %v1495 = vld [vmem:[#allocation2 + $0x12] sm:$0xff]
    %v1496 = vld [vmem:[#allocation2 + $0x1a] sm:$0xff]
    %v1497 = vld [vmem:[#allocation2 + $0x22] sm:$0xff]
    %1498 = vset.pattern.permute.xlu0 10
    %1499 = vperm.xlu0 %1498, %v63
    %v1500 = vpop.permute.xlu0 %1499
    %1501 = vset.pattern.permute.xlu0 10
    %1502 = vperm.xlu0 %1501, %v64
    %v1503 = vpop.permute.xlu0 %1502
    %1504 = vset.pattern.permute.xlu0 10
    %1505 = vperm.xlu0 %1504, %v65
    %v1506 = vpop.permute.xlu0 %1505
    %1507 = vset.pattern.permute.xlu0 10
    %1508 = vperm.xlu0 %1507, %v66
    %v1509 = vpop.permute.xlu0 %1508
    %vm1510 = vcmp.eq.s32.totalorder %v1500, 1
    %vm1511 = vcmp.eq.s32.totalorder %v1503, 1
    %vm1512 = vcmp.eq.s32.totalorder %v1506, 1
    %vm1513 = vcmp.eq.s32.totalorder %v1509, 1
    %v1514 = vsel %vm1510, %v1494, 0.0
    %v1515 = vsel %vm1511, %v1495, 0.0
    %v1516 = vsel %vm1512, %v1496, 0.0
    %v1517 = vsel %vm1513, %v1497, 0.0
    %v1518 = vpack.c.bf16 %v1515, %v1514
    %v1519 = vpack.c.bf16 %v1517, %v1516
    %s1520 = scalar_lea.vmem [#allocation4], 640
    %v1521 = vld [vmem:[%s1520] sm:$0xf]
    %v1522 = vld [vmem:[%s1520 + $0x4] sm:$0xf]
    %v1523 = vld [vmem:[%s1520 + $0x8] sm:$0xf]
    %v1524 = vld [vmem:[%s1520 + $0xc] sm:$0xf]
    %v1525 = vld [vmem:[%s1520 + $0x10] sm:$0xf]
    %v1526 = vld [vmem:[%s1520 + $0x14] sm:$0xf]
    %v1527 = vld [vmem:[%s1520 + $0x18] sm:$0xf]
    %v1528 = vld [vmem:[%s1520 + $0x1c] sm:$0xf]
    %v1529 = vld [vmem:[%s1520 + $0x20] sm:$0xf]
    %v1530 = vld [vmem:[%s1520 + $0x24] sm:$0xf]
    %v1531 = vld [vmem:[%s1520 + $0x28] sm:$0xf]
    %v1532 = vld [vmem:[%s1520 + $0x2c] sm:$0xf]
    %v1533 = vld [vmem:[%s1520 + $0x30] sm:$0xf]
    %v1534 = vld [vmem:[%s1520 + $0x34] sm:$0xf]
    %v1535 = vld [vmem:[%s1520 + $0x38] sm:$0xf]
    %v1536 = vld [vmem:[%s1520 + $0x3c] sm:$0xf]
    %v1553 = vunpack.c.l.b16 %v1521
    %v1554 = vunpack.c.l.b16 %v1522
    %v1555 = vunpack.c.l.b16 %v1523
    %v1556 = vunpack.c.l.b16 %v1524
    %v1557 = vunpack.c.l.b16 %v1525
    %v1558 = vunpack.c.l.b16 %v1526
    %v1559 = vunpack.c.l.b16 %v1527
    %v1560 = vunpack.c.l.b16 %v1528
    %v1561 = vunpack.c.l.b16 %v1529
    %v1562 = vunpack.c.l.b16 %v1530
    %v1563 = vunpack.c.l.b16 %v1531
    %v1564 = vunpack.c.l.b16 %v1532
    %v1565 = vunpack.c.l.b16 %v1533
    %v1566 = vunpack.c.l.b16 %v1534
    %v1567 = vunpack.c.l.b16 %v1535
    %v1568 = vunpack.c.l.b16 %v1536
    %v1569 = vpack.c.b16 %v1554, %v1553
    %v1570 = vpack.c.b16 %v1556, %v1555
    %v1571 = vpack.c.b16 %v1558, %v1557
    %v1572 = vpack.c.b16 %v1560, %v1559
    %v1573 = vpack.c.b16 %v1562, %v1561
    %v1574 = vpack.c.b16 %v1564, %v1563
    %v1575 = vpack.c.b16 %v1566, %v1565
    %v1576 = vpack.c.b16 %v1568, %v1567
    %1585 = vmatprep.subr.bf16.mxu0 0
    %1586 = vmatpush1.bf16.msra.mxu0 %v1569
    %1587 = vmatprep.subr.bf16.mxu0 0
    %1588 = vmatpush1.bf16.msra.mxu0 %v1570
    %1589 = vmatprep.subr.bf16.mxu0 0
    %1590 = vmatpush1.bf16.msra.mxu0 %v1571
    %1591 = vmatprep.subr.bf16.mxu0 0
    %1592 = vmatpush1.bf16.msra.mxu0 %v1572
    %1593 = vmatprep.subr.bf16.mxu0 0
    %1594 = vmatpush1.bf16.msra.mxu0 %v1573
    %1595 = vmatprep.subr.bf16.mxu0 0
    %1596 = vmatpush1.bf16.msra.mxu0 %v1574
    %1597 = vmatprep.subr.bf16.mxu0 0
    %1598 = vmatpush1.bf16.msra.mxu0 %v1575
    %1599 = vmatprep.subr.bf16.mxu0 0
    %1600 = vmatpush1.bf16.msra.mxu0 %v1576
    %1601 = vmatprep.subr.bf16.mxu0 0
    %1602 = vmatpush1.bf16.msra.mxu0 0
    %1603 = vmatprep.subr.bf16.mxu0 0
    %1604 = vmatpush1.bf16.msra.mxu0 0
    %1605 = vmatprep.subr.bf16.mxu0 0
    %1606 = vmatpush1.bf16.msra.mxu0 0
    %1607 = vmatprep.subr.bf16.mxu0 0
    %1608 = vmatpush1.bf16.msra.mxu0 0
    %1609 = vmatprep.subr.bf16.mxu0 0
    %1610 = vmatpush1.bf16.msra.mxu0 0
    %1611 = vmatprep.subr.bf16.mxu0 0
    %1612 = vmatpush1.bf16.msra.mxu0 0
    %1613 = vmatprep.subr.bf16.mxu0 0
    %1614 = vmatpush1.bf16.msra.mxu0 0
    %1615 = vmatprep.subr.bf16.mxu0 0
    %1616 = vmatpush1.bf16.msra.mxu0 0
    %1617 = vmatprep.mubr.bf16.mxu0 0
    %1618 = vmatmul.mubr.bf16.gmra.mrb[0].mxu0 %v1518
    %v1619 = vpop.f32.mrb[0].mxu0
    %v1620 = vadd.f32 0.0, %v1619
    %v1621 = vpop.f32.mrb[0].mxu0
    %v1622 = vpop.f32.mrb[0].mxu0
    %v1623 = vadd.f32 0.0, %v1622
    %v1624 = vpop.f32.mrb[0].mxu0
    %1625 = vmatprep.mubr.bf16.mxu0 0
    %1626 = vmatmul.mubr.bf16.gmra.mrb[0].mxu0 %v1519
    %v1627 = vpop.f32.mrb[0].mxu0
    %v1628 = vadd.f32 0.0, %v1627
    %v1629 = vpop.f32.mrb[0].mxu0
    %v1630 = vpop.f32.mrb[0].mxu0
    %v1631 = vadd.f32 0.0, %v1630
    %v1632 = vpop.f32.mrb[0].mxu0
    %1633 = vdwg.mxu0
    %v1634 = vadd.f32 %v1490, %v1620
    %v1635 = vadd.f32 %v1491, %v1623
    %v1636 = vadd.f32 %v1492, %v1628
    %v1637 = vadd.f32 %v1493, %v1631
    %v1638 = vld [vmem:[#allocation2 + $0xb] sm:$0xff]
    %v1639 = vld [vmem:[#allocation2 + $0x13] sm:$0xff]
    %v1640 = vld [vmem:[#allocation2 + $0x1b] sm:$0xff]
    %v1641 = vld [vmem:[#allocation2 + $0x23] sm:$0xff]
    %1642 = vset.pattern.permute.xlu0 11
    %1643 = vperm.xlu0 %1642, %v63
    %v1644 = vpop.permute.xlu0 %1643
    %1645 = vset.pattern.permute.xlu0 11
    %1646 = vperm.xlu0 %1645, %v64
    %v1647 = vpop.permute.xlu0 %1646
    %1648 = vset.pattern.permute.xlu0 11
    %1649 = vperm.xlu0 %1648, %v65
    %v1650 = vpop.permute.xlu0 %1649
    %1651 = vset.pattern.permute.xlu0 11
    %1652 = vperm.xlu0 %1651, %v66
    %v1653 = vpop.permute.xlu0 %1652
    %vm1654 = vcmp.eq.s32.totalorder %v1644, 1
    %vm1655 = vcmp.eq.s32.totalorder %v1647, 1
    %vm1656 = vcmp.eq.s32.totalorder %v1650, 1
    %vm1657 = vcmp.eq.s32.totalorder %v1653, 1
    %v1658 = vsel %vm1654, %v1638, 0.0
    %v1659 = vsel %vm1655, %v1639, 0.0
    %v1660 = vsel %vm1656, %v1640, 0.0
    %v1661 = vsel %vm1657, %v1641, 0.0
    %v1662 = vpack.c.bf16 %v1659, %v1658
    %v1663 = vpack.c.bf16 %v1661, %v1660
    %s1664 = scalar_lea.vmem [#allocation4], 704
    %v1665 = vld [vmem:[%s1664] sm:$0xf]
    %v1666 = vld [vmem:[%s1664 + $0x4] sm:$0xf]
    %v1667 = vld [vmem:[%s1664 + $0x8] sm:$0xf]
    %v1668 = vld [vmem:[%s1664 + $0xc] sm:$0xf]
    %v1669 = vld [vmem:[%s1664 + $0x10] sm:$0xf]
    %v1670 = vld [vmem:[%s1664 + $0x14] sm:$0xf]
    %v1671 = vld [vmem:[%s1664 + $0x18] sm:$0xf]
    %v1672 = vld [vmem:[%s1664 + $0x1c] sm:$0xf]
    %v1673 = vld [vmem:[%s1664 + $0x20] sm:$0xf]
    %v1674 = vld [vmem:[%s1664 + $0x24] sm:$0xf]
    %v1675 = vld [vmem:[%s1664 + $0x28] sm:$0xf]
    %v1676 = vld [vmem:[%s1664 + $0x2c] sm:$0xf]
    %v1677 = vld [vmem:[%s1664 + $0x30] sm:$0xf]
    %v1678 = vld [vmem:[%s1664 + $0x34] sm:$0xf]
    %v1679 = vld [vmem:[%s1664 + $0x38] sm:$0xf]
    %v1680 = vld [vmem:[%s1664 + $0x3c] sm:$0xf]
    %v1697 = vunpack.c.l.b16 %v1665
    %v1698 = vunpack.c.l.b16 %v1666
    %v1699 = vunpack.c.l.b16 %v1667
    %v1700 = vunpack.c.l.b16 %v1668
    %v1701 = vunpack.c.l.b16 %v1669
    %v1702 = vunpack.c.l.b16 %v1670
    %v1703 = vunpack.c.l.b16 %v1671
    %v1704 = vunpack.c.l.b16 %v1672
    %v1705 = vunpack.c.l.b16 %v1673
    %v1706 = vunpack.c.l.b16 %v1674
    %v1707 = vunpack.c.l.b16 %v1675
    %v1708 = vunpack.c.l.b16 %v1676
    %v1709 = vunpack.c.l.b16 %v1677
    %v1710 = vunpack.c.l.b16 %v1678
    %v1711 = vunpack.c.l.b16 %v1679
    %v1712 = vunpack.c.l.b16 %v1680
    %v1713 = vpack.c.b16 %v1698, %v1697
    %v1714 = vpack.c.b16 %v1700, %v1699
    %v1715 = vpack.c.b16 %v1702, %v1701
    %v1716 = vpack.c.b16 %v1704, %v1703
    %v1717 = vpack.c.b16 %v1706, %v1705
    %v1718 = vpack.c.b16 %v1708, %v1707
    %v1719 = vpack.c.b16 %v1710, %v1709
    %v1720 = vpack.c.b16 %v1712, %v1711
    %1729 = vmatprep.subr.bf16.mxu0 0
    %1730 = vmatpush1.bf16.msra.mxu0 %v1713
    %1731 = vmatprep.subr.bf16.mxu0 0
    %1732 = vmatpush1.bf16.msra.mxu0 %v1714
    %1733 = vmatprep.subr.bf16.mxu0 0
    %1734 = vmatpush1.bf16.msra.mxu0 %v1715
    %1735 = vmatprep.subr.bf16.mxu0 0
    %1736 = vmatpush1.bf16.msra.mxu0 %v1716
    %1737 = vmatprep.subr.bf16.mxu0 0
    %1738 = vmatpush1.bf16.msra.mxu0 %v1717
    %1739 = vmatprep.subr.bf16.mxu0 0
    %1740 = vmatpush1.bf16.msra.mxu0 %v1718
    %1741 = vmatprep.subr.bf16.mxu0 0
    %1742 = vmatpush1.bf16.msra.mxu0 %v1719
    %1743 = vmatprep.subr.bf16.mxu0 0
    %1744 = vmatpush1.bf16.msra.mxu0 %v1720
    %1745 = vmatprep.subr.bf16.mxu0 0
    %1746 = vmatpush1.bf16.msra.mxu0 0
    %1747 = vmatprep.subr.bf16.mxu0 0
    %1748 = vmatpush1.bf16.msra.mxu0 0
    %1749 = vmatprep.subr.bf16.mxu0 0
    %1750 = vmatpush1.bf16.msra.mxu0 0
    %1751 = vmatprep.subr.bf16.mxu0 0
    %1752 = vmatpush1.bf16.msra.mxu0 0
    %1753 = vmatprep.subr.bf16.mxu0 0
    %1754 = vmatpush1.bf16.msra.mxu0 0
    %1755 = vmatprep.subr.bf16.mxu0 0
    %1756 = vmatpush1.bf16.msra.mxu0 0
    %1757 = vmatprep.subr.bf16.mxu0 0
    %1758 = vmatpush1.bf16.msra.mxu0 0
    %1759 = vmatprep.subr.bf16.mxu0 0
    %1760 = vmatpush1.bf16.msra.mxu0 0
    %1761 = vmatprep.mubr.bf16.mxu0 0
    %1762 = vmatmul.mubr.bf16.gmra.mrb[0].mxu0 %v1662
    %v1763 = vpop.f32.mrb[0].mxu0
    %v1764 = vadd.f32 0.0, %v1763
    %v1765 = vpop.f32.mrb[0].mxu0
    %v1766 = vpop.f32.mrb[0].mxu0
    %v1767 = vadd.f32 0.0, %v1766
    %v1768 = vpop.f32.mrb[0].mxu0
    %1769 = vmatprep.mubr.bf16.mxu0 0
    %1770 = vmatmul.mubr.bf16.gmra.mrb[0].mxu0 %v1663
    %v1771 = vpop.f32.mrb[0].mxu0
    %v1772 = vadd.f32 0.0, %v1771
    %v1773 = vpop.f32.mrb[0].mxu0
    %v1774 = vpop.f32.mrb[0].mxu0
    %v1775 = vadd.f32 0.0, %v1774
    %v1776 = vpop.f32.mrb[0].mxu0
    %1777 = vdwg.mxu0
    %v1778 = vadd.f32 %v1634, %v1764
    %v1779 = vadd.f32 %v1635, %v1767
    %v1780 = vadd.f32 %v1636, %v1772
    %v1781 = vadd.f32 %v1637, %v1775
    %v1782 = vld [vmem:[#allocation2 + $0xc] sm:$0xff]
    %v1783 = vld [vmem:[#allocation2 + $0x14] sm:$0xff]
    %v1784 = vld [vmem:[#allocation2 + $0x1c] sm:$0xff]
    %v1785 = vld [vmem:[#allocation2 + $0x24] sm:$0xff]
    %1786 = vset.pattern.permute.xlu0 12
    %1787 = vperm.xlu0 %1786, %v63
    %v1788 = vpop.permute.xlu0 %1787
    %1789 = vset.pattern.permute.xlu0 12
    %1790 = vperm.xlu0 %1789, %v64
    %v1791 = vpop.permute.xlu0 %1790
    %1792 = vset.pattern.permute.xlu0 12
    %1793 = vperm.xlu0 %1792, %v65
    %v1794 = vpop.permute.xlu0 %1793
    %1795 = vset.pattern.permute.xlu0 12
    %1796 = vperm.xlu0 %1795, %v66
    %v1797 = vpop.permute.xlu0 %1796
    %vm1798 = vcmp.eq.s32.totalorder %v1788, 1
    %vm1799 = vcmp.eq.s32.totalorder %v1791, 1
    %vm1800 = vcmp.eq.s32.totalorder %v1794, 1
    %vm1801 = vcmp.eq.s32.totalorder %v1797, 1
    %v1802 = vsel %vm1798, %v1782, 0.0
    %v1803 = vsel %vm1799, %v1783, 0.0
    %v1804 = vsel %vm1800, %v1784, 0.0
    %v1805 = vsel %vm1801, %v1785, 0.0
    %v1806 = vpack.c.bf16 %v1803, %v1802
    %v1807 = vpack.c.bf16 %v1805, %v1804
    %s1808 = scalar_lea.vmem [#allocation4], 768
    %v1809 = vld [vmem:[%s1808] sm:$0xf]
    %v1810 = vld [vmem:[%s1808 + $0x4] sm:$0xf]
    %v1811 = vld [vmem:[%s1808 + $0x8] sm:$0xf]
    %v1812 = vld [vmem:[%s1808 + $0xc] sm:$0xf]
    %v1813 = vld [vmem:[%s1808 + $0x10] sm:$0xf]
    %v1814 = vld [vmem:[%s1808 + $0x14] sm:$0xf]
    %v1815 = vld [vmem:[%s1808 + $0x18] sm:$0xf]
    %v1816 = vld [vmem:[%s1808 + $0x1c] sm:$0xf]
    %v1817 = vld [vmem:[%s1808 + $0x20] sm:$0xf]
    %v1818 = vld [vmem:[%s1808 + $0x24] sm:$0xf]
    %v1819 = vld [vmem:[%s1808 + $0x28] sm:$0xf]
    %v1820 = vld [vmem:[%s1808 + $0x2c] sm:$0xf]
    %v1821 = vld [vmem:[%s1808 + $0x30] sm:$0xf]
    %v1822 = vld [vmem:[%s1808 + $0x34] sm:$0xf]
    %v1823 = vld [vmem:[%s1808 + $0x38] sm:$0xf]
    %v1824 = vld [vmem:[%s1808 + $0x3c] sm:$0xf]
    %v1841 = vunpack.c.l.b16 %v1809
    %v1842 = vunpack.c.l.b16 %v1810
    %v1843 = vunpack.c.l.b16 %v1811
    %v1844 = vunpack.c.l.b16 %v1812
    %v1845 = vunpack.c.l.b16 %v1813
    %v1846 = vunpack.c.l.b16 %v1814
    %v1847 = vunpack.c.l.b16 %v1815
    %v1848 = vunpack.c.l.b16 %v1816
    %v1849 = vunpack.c.l.b16 %v1817
    %v1850 = vunpack.c.l.b16 %v1818
    %v1851 = vunpack.c.l.b16 %v1819
    %v1852 = vunpack.c.l.b16 %v1820
    %v1853 = vunpack.c.l.b16 %v1821
    %v1854 = vunpack.c.l.b16 %v1822
    %v1855 = vunpack.c.l.b16 %v1823
    %v1856 = vunpack.c.l.b16 %v1824
    %v1857 = vpack.c.b16 %v1842, %v1841
    %v1858 = vpack.c.b16 %v1844, %v1843
    %v1859 = vpack.c.b16 %v1846, %v1845
    %v1860 = vpack.c.b16 %v1848, %v1847
    %v1861 = vpack.c.b16 %v1850, %v1849
    %v1862 = vpack.c.b16 %v1852, %v1851
    %v1863 = vpack.c.b16 %v1854, %v1853
    %v1864 = vpack.c.b16 %v1856, %v1855
    %1873 = vmatprep.subr.bf16.mxu0 0
    %1874 = vmatpush1.bf16.msra.mxu0 %v1857
    %1875 = vmatprep.subr.bf16.mxu0 0
    %1876 = vmatpush1.bf16.msra.mxu0 %v1858
    %1877 = vmatprep.subr.bf16.mxu0 0
    %1878 = vmatpush1.bf16.msra.mxu0 %v1859
    %1879 = vmatprep.subr.bf16.mxu0 0
    %1880 = vmatpush1.bf16.msra.mxu0 %v1860
    %1881 = vmatprep.subr.bf16.mxu0 0
    %1882 = vmatpush1.bf16.msra.mxu0 %v1861
    %1883 = vmatprep.subr.bf16.mxu0 0
    %1884 = vmatpush1.bf16.msra.mxu0 %v1862
    %1885 = vmatprep.subr.bf16.mxu0 0
    %1886 = vmatpush1.bf16.msra.mxu0 %v1863
    %1887 = vmatprep.subr.bf16.mxu0 0
    %1888 = vmatpush1.bf16.msra.mxu0 %v1864
    %1889 = vmatprep.subr.bf16.mxu0 0
    %1890 = vmatpush1.bf16.msra.mxu0 0
    %1891 = vmatprep.subr.bf16.mxu0 0
    %1892 = vmatpush1.bf16.msra.mxu0 0
    %1893 = vmatprep.subr.bf16.mxu0 0
    %1894 = vmatpush1.bf16.msra.mxu0 0
    %1895 = vmatprep.subr.bf16.mxu0 0
    %1896 = vmatpush1.bf16.msra.mxu0 0
    %1897 = vmatprep.subr.bf16.mxu0 0
    %1898 = vmatpush1.bf16.msra.mxu0 0
    %1899 = vmatprep.subr.bf16.mxu0 0
    %1900 = vmatpush1.bf16.msra.mxu0 0
    %1901 = vmatprep.subr.bf16.mxu0 0
    %1902 = vmatpush1.bf16.msra.mxu0 0
    %1903 = vmatprep.subr.bf16.mxu0 0
    %1904 = vmatpush1.bf16.msra.mxu0 0
    %1905 = vmatprep.mubr.bf16.mxu0 0
    %1906 = vmatmul.mubr.bf16.gmra.mrb[0].mxu0 %v1806
    %v1907 = vpop.f32.mrb[0].mxu0
    %v1908 = vadd.f32 0.0, %v1907
    %v1909 = vpop.f32.mrb[0].mxu0
    %v1910 = vpop.f32.mrb[0].mxu0
    %v1911 = vadd.f32 0.0, %v1910
    %v1912 = vpop.f32.mrb[0].mxu0
    %1913 = vmatprep.mubr.bf16.mxu0 0
    %1914 = vmatmul.mubr.bf16.gmra.mrb[0].mxu0 %v1807
    %v1915 = vpop.f32.mrb[0].mxu0
    %v1916 = vadd.f32 0.0, %v1915
    %v1917 = vpop.f32.mrb[0].mxu0
    %v1918 = vpop.f32.mrb[0].mxu0
    %v1919 = vadd.f32 0.0, %v1918
    %v1920 = vpop.f32.mrb[0].mxu0
    %1921 = vdwg.mxu0
    %v1922 = vadd.f32 %v1778, %v1908
    %v1923 = vadd.f32 %v1779, %v1911
    %v1924 = vadd.f32 %v1780, %v1916
    %v1925 = vadd.f32 %v1781, %v1919
    %v1926 = vld [vmem:[#allocation2 + $0xd] sm:$0xff]
    %v1927 = vld [vmem:[#allocation2 + $0x15] sm:$0xff]
    %v1928 = vld [vmem:[#allocation2 + $0x1d] sm:$0xff]
    %v1929 = vld [vmem:[#allocation2 + $0x25] sm:$0xff]
    %1930 = vset.pattern.permute.xlu0 13
    %1931 = vperm.xlu0 %1930, %v63
    %v1932 = vpop.permute.xlu0 %1931
    %1933 = vset.pattern.permute.xlu0 13
    %1934 = vperm.xlu0 %1933, %v64
    %v1935 = vpop.permute.xlu0 %1934
    %1936 = vset.pattern.permute.xlu0 13
    %1937 = vperm.xlu0 %1936, %v65
    %v1938 = vpop.permute.xlu0 %1937
    %1939 = vset.pattern.permute.xlu0 13
    %1940 = vperm.xlu0 %1939, %v66
    %v1941 = vpop.permute.xlu0 %1940
    %vm1942 = vcmp.eq.s32.totalorder %v1932, 1
    %vm1943 = vcmp.eq.s32.totalorder %v1935, 1
    %vm1944 = vcmp.eq.s32.totalorder %v1938, 1
    %vm1945 = vcmp.eq.s32.totalorder %v1941, 1
    %v1946 = vsel %vm1942, %v1926, 0.0
    %v1947 = vsel %vm1943, %v1927, 0.0
    %v1948 = vsel %vm1944, %v1928, 0.0
    %v1949 = vsel %vm1945, %v1929, 0.0
    %v1950 = vpack.c.bf16 %v1947, %v1946
    %v1951 = vpack.c.bf16 %v1949, %v1948
    %s1952 = scalar_lea.vmem [#allocation4], 832
    %v1953 = vld [vmem:[%s1952] sm:$0xf]
    %v1954 = vld [vmem:[%s1952 + $0x4] sm:$0xf]
    %v1955 = vld [vmem:[%s1952 + $0x8] sm:$0xf]
    %v1956 = vld [vmem:[%s1952 + $0xc] sm:$0xf]
    %v1957 = vld [vmem:[%s1952 + $0x10] sm:$0xf]
    %v1958 = vld [vmem:[%s1952 + $0x14] sm:$0xf]
    %v1959 = vld [vmem:[%s1952 + $0x18] sm:$0xf]
    %v1960 = vld [vmem:[%s1952 + $0x1c] sm:$0xf]
    %v1961 = vld [vmem:[%s1952 + $0x20] sm:$0xf]
    %v1962 = vld [vmem:[%s1952 + $0x24] sm:$0xf]
    %v1963 = vld [vmem:[%s1952 + $0x28] sm:$0xf]
    %v1964 = vld [vmem:[%s1952 + $0x2c] sm:$0xf]
    %v1965 = vld [vmem:[%s1952 + $0x30] sm:$0xf]
    %v1966 = vld [vmem:[%s1952 + $0x34] sm:$0xf]
    %v1967 = vld [vmem:[%s1952 + $0x38] sm:$0xf]
    %v1968 = vld [vmem:[%s1952 + $0x3c] sm:$0xf]
    %v1985 = vunpack.c.l.b16 %v1953
    %v1986 = vunpack.c.l.b16 %v1954
    %v1987 = vunpack.c.l.b16 %v1955
    %v1988 = vunpack.c.l.b16 %v1956
    %v1989 = vunpack.c.l.b16 %v1957
    %v1990 = vunpack.c.l.b16 %v1958
    %v1991 = vunpack.c.l.b16 %v1959
    %v1992 = vunpack.c.l.b16 %v1960
    %v1993 = vunpack.c.l.b16 %v1961
    %v1994 = vunpack.c.l.b16 %v1962
    %v1995 = vunpack.c.l.b16 %v1963
    %v1996 = vunpack.c.l.b16 %v1964
    %v1997 = vunpack.c.l.b16 %v1965
    %v1998 = vunpack.c.l.b16 %v1966
    %v1999 = vunpack.c.l.b16 %v1967
    %v2000 = vunpack.c.l.b16 %v1968
    %v2001 = vpack.c.b16 %v1986, %v1985
    %v2002 = vpack.c.b16 %v1988, %v1987
    %v2003 = vpack.c.b16 %v1990, %v1989
    %v2004 = vpack.c.b16 %v1992, %v1991
    %v2005 = vpack.c.b16 %v1994, %v1993
    %v2006 = vpack.c.b16 %v1996, %v1995
    %v2007 = vpack.c.b16 %v1998, %v1997
    %v2008 = vpack.c.b16 %v2000, %v1999
    %2017 = vmatprep.subr.bf16.mxu0 0
    %2018 = vmatpush1.bf16.msra.mxu0 %v2001
    %2019 = vmatprep.subr.bf16.mxu0 0
    %2020 = vmatpush1.bf16.msra.mxu0 %v2002
    %2021 = vmatprep.subr.bf16.mxu0 0
    %2022 = vmatpush1.bf16.msra.mxu0 %v2003
    %2023 = vmatprep.subr.bf16.mxu0 0
    %2024 = vmatpush1.bf16.msra.mxu0 %v2004
    %2025 = vmatprep.subr.bf16.mxu0 0
    %2026 = vmatpush1.bf16.msra.mxu0 %v2005
    %2027 = vmatprep.subr.bf16.mxu0 0
    %2028 = vmatpush1.bf16.msra.mxu0 %v2006
    %2029 = vmatprep.subr.bf16.mxu0 0
    %2030 = vmatpush1.bf16.msra.mxu0 %v2007
    %2031 = vmatprep.subr.bf16.mxu0 0
    %2032 = vmatpush1.bf16.msra.mxu0 %v2008
    %2033 = vmatprep.subr.bf16.mxu0 0
    %2034 = vmatpush1.bf16.msra.mxu0 0
    %2035 = vmatprep.subr.bf16.mxu0 0
    %2036 = vmatpush1.bf16.msra.mxu0 0
    %2037 = vmatprep.subr.bf16.mxu0 0
    %2038 = vmatpush1.bf16.msra.mxu0 0
    %2039 = vmatprep.subr.bf16.mxu0 0
    %2040 = vmatpush1.bf16.msra.mxu0 0
    %2041 = vmatprep.subr.bf16.mxu0 0
    %2042 = vmatpush1.bf16.msra.mxu0 0
    %2043 = vmatprep.subr.bf16.mxu0 0
    %2044 = vmatpush1.bf16.msra.mxu0 0
    %2045 = vmatprep.subr.bf16.mxu0 0
    %2046 = vmatpush1.bf16.msra.mxu0 0
    %2047 = vmatprep.subr.bf16.mxu0 0
    %2048 = vmatpush1.bf16.msra.mxu0 0
    %2049 = vmatprep.mubr.bf16.mxu0 0
    %2050 = vmatmul.mubr.bf16.gmra.mrb[0].mxu0 %v1950
    %v2051 = vpop.f32.mrb[0].mxu0
    %v2052 = vadd.f32 0.0, %v2051
    %v2053 = vpop.f32.mrb[0].mxu0
    %v2054 = vpop.f32.mrb[0].mxu0
    %v2055 = vadd.f32 0.0, %v2054
    %v2056 = vpop.f32.mrb[0].mxu0
    %2057 = vmatprep.mubr.bf16.mxu0 0
    %2058 = vmatmul.mubr.bf16.gmra.mrb[0].mxu0 %v1951
    %v2059 = vpop.f32.mrb[0].mxu0
    %v2060 = vadd.f32 0.0, %v2059
    %v2061 = vpop.f32.mrb[0].mxu0
    %v2062 = vpop.f32.mrb[0].mxu0
    %v2063 = vadd.f32 0.0, %v2062
    %v2064 = vpop.f32.mrb[0].mxu0
    %2065 = vdwg.mxu0
    %v2066 = vadd.f32 %v1922, %v2052
    %v2067 = vadd.f32 %v1923, %v2055
    %v2068 = vadd.f32 %v1924, %v2060
    %v2069 = vadd.f32 %v1925, %v2063
    %v2070 = vld [vmem:[#allocation2 + $0xe] sm:$0xff]
    %v2071 = vld [vmem:[#allocation2 + $0x16] sm:$0xff]
    %v2072 = vld [vmem:[#allocation2 + $0x1e] sm:$0xff]
    %v2073 = vld [vmem:[#allocation2 + $0x26] sm:$0xff]
    %2074 = vset.pattern.permute.xlu0 14
    %2075 = vperm.xlu0 %2074, %v63
    %v2076 = vpop.permute.xlu0 %2075
    %2077 = vset.pattern.permute.xlu0 14
    %2078 = vperm.xlu0 %2077, %v64
    %v2079 = vpop.permute.xlu0 %2078
    %2080 = vset.pattern.permute.xlu0 14
    %2081 = vperm.xlu0 %2080, %v65
    %v2082 = vpop.permute.xlu0 %2081
    %2083 = vset.pattern.permute.xlu0 14
    %2084 = vperm.xlu0 %2083, %v66
    %v2085 = vpop.permute.xlu0 %2084
    %vm2086 = vcmp.eq.s32.totalorder %v2076, 1
    %vm2087 = vcmp.eq.s32.totalorder %v2079, 1
    %vm2088 = vcmp.eq.s32.totalorder %v2082, 1
    %vm2089 = vcmp.eq.s32.totalorder %v2085, 1
    %v2090 = vsel %vm2086, %v2070, 0.0
    %v2091 = vsel %vm2087, %v2071, 0.0
    %v2092 = vsel %vm2088, %v2072, 0.0
    %v2093 = vsel %vm2089, %v2073, 0.0
    %v2094 = vpack.c.bf16 %v2091, %v2090
    %v2095 = vpack.c.bf16 %v2093, %v2092
    %s2096 = scalar_lea.vmem [#allocation4], 896
    %v2097 = vld [vmem:[%s2096] sm:$0xf]
    %v2098 = vld [vmem:[%s2096 + $0x4] sm:$0xf]
    %v2099 = vld [vmem:[%s2096 + $0x8] sm:$0xf]
    %v2100 = vld [vmem:[%s2096 + $0xc] sm:$0xf]
    %v2101 = vld [vmem:[%s2096 + $0x10] sm:$0xf]
    %v2102 = vld [vmem:[%s2096 + $0x14] sm:$0xf]
    %v2103 = vld [vmem:[%s2096 + $0x18] sm:$0xf]
    %v2104 = vld [vmem:[%s2096 + $0x1c] sm:$0xf]
    %v2105 = vld [vmem:[%s2096 + $0x20] sm:$0xf]
    %v2106 = vld [vmem:[%s2096 + $0x24] sm:$0xf]
    %v2107 = vld [vmem:[%s2096 + $0x28] sm:$0xf]
    %v2108 = vld [vmem:[%s2096 + $0x2c] sm:$0xf]
    %v2109 = vld [vmem:[%s2096 + $0x30] sm:$0xf]
    %v2110 = vld [vmem:[%s2096 + $0x34] sm:$0xf]
    %v2111 = vld [vmem:[%s2096 + $0x38] sm:$0xf]
    %v2112 = vld [vmem:[%s2096 + $0x3c] sm:$0xf]
    %v2129 = vunpack.c.l.b16 %v2097
    %v2130 = vunpack.c.l.b16 %v2098
    %v2131 = vunpack.c.l.b16 %v2099
    %v2132 = vunpack.c.l.b16 %v2100
    %v2133 = vunpack.c.l.b16 %v2101
    %v2134 = vunpack.c.l.b16 %v2102
    %v2135 = vunpack.c.l.b16 %v2103
    %v2136 = vunpack.c.l.b16 %v2104
    %v2137 = vunpack.c.l.b16 %v2105
    %v2138 = vunpack.c.l.b16 %v2106
    %v2139 = vunpack.c.l.b16 %v2107
    %v2140 = vunpack.c.l.b16 %v2108
    %v2141 = vunpack.c.l.b16 %v2109
    %v2142 = vunpack.c.l.b16 %v2110
    %v2143 = vunpack.c.l.b16 %v2111
    %v2144 = vunpack.c.l.b16 %v2112
    %v2145 = vpack.c.b16 %v2130, %v2129
    %v2146 = vpack.c.b16 %v2132, %v2131
    %v2147 = vpack.c.b16 %v2134, %v2133
    %v2148 = vpack.c.b16 %v2136, %v2135
    %v2149 = vpack.c.b16 %v2138, %v2137
    %v2150 = vpack.c.b16 %v2140, %v2139
    %v2151 = vpack.c.b16 %v2142, %v2141
    %v2152 = vpack.c.b16 %v2144, %v2143
    %2161 = vmatprep.subr.bf16.mxu0 0
    %2162 = vmatpush1.bf16.msra.mxu0 %v2145
    %2163 = vmatprep.subr.bf16.mxu0 0
    %2164 = vmatpush1.bf16.msra.mxu0 %v2146
    %2165 = vmatprep.subr.bf16.mxu0 0
    %2166 = vmatpush1.bf16.msra.mxu0 %v2147
    %2167 = vmatprep.subr.bf16.mxu0 0
    %2168 = vmatpush1.bf16.msra.mxu0 %v2148
    %2169 = vmatprep.subr.bf16.mxu0 0
    %2170 = vmatpush1.bf16.msra.mxu0 %v2149
    %2171 = vmatprep.subr.bf16.mxu0 0
    %2172 = vmatpush1.bf16.msra.mxu0 %v2150
    %2173 = vmatprep.subr.bf16.mxu0 0
    %2174 = vmatpush1.bf16.msra.mxu0 %v2151
    %2175 = vmatprep.subr.bf16.mxu0 0
    %2176 = vmatpush1.bf16.msra.mxu0 %v2152
    %2177 = vmatprep.subr.bf16.mxu0 0
    %2178 = vmatpush1.bf16.msra.mxu0 0
    %2179 = vmatprep.subr.bf16.mxu0 0
    %2180 = vmatpush1.bf16.msra.mxu0 0
    %2181 = vmatprep.subr.bf16.mxu0 0
    %2182 = vmatpush1.bf16.msra.mxu0 0
    %2183 = vmatprep.subr.bf16.mxu0 0
    %2184 = vmatpush1.bf16.msra.mxu0 0
    %2185 = vmatprep.subr.bf16.mxu0 0
    %2186 = vmatpush1.bf16.msra.mxu0 0
    %2187 = vmatprep.subr.bf16.mxu0 0
    %2188 = vmatpush1.bf16.msra.mxu0 0
    %2189 = vmatprep.subr.bf16.mxu0 0
    %2190 = vmatpush1.bf16.msra.mxu0 0
    %2191 = vmatprep.subr.bf16.mxu0 0
    %2192 = vmatpush1.bf16.msra.mxu0 0
    %2193 = vmatprep.mubr.bf16.mxu0 0
    %2194 = vmatmul.mubr.bf16.gmra.mrb[0].mxu0 %v2094
    %v2195 = vpop.f32.mrb[0].mxu0
    %v2196 = vadd.f32 0.0, %v2195
    %v2197 = vpop.f32.mrb[0].mxu0
    %v2198 = vpop.f32.mrb[0].mxu0
    %v2199 = vadd.f32 0.0, %v2198
    %v2200 = vpop.f32.mrb[0].mxu0
    %2201 = vmatprep.mubr.bf16.mxu0 0
    %2202 = vmatmul.mubr.bf16.gmra.mrb[0].mxu0 %v2095
    %v2203 = vpop.f32.mrb[0].mxu0
    %v2204 = vadd.f32 0.0, %v2203
    %v2205 = vpop.f32.mrb[0].mxu0
    %v2206 = vpop.f32.mrb[0].mxu0
    %v2207 = vadd.f32 0.0, %v2206
    %v2208 = vpop.f32.mrb[0].mxu0
    %2209 = vdwg.mxu0
    %v2210 = vadd.f32 %v2066, %v2196
    %v2211 = vadd.f32 %v2067, %v2199
    %v2212 = vadd.f32 %v2068, %v2204
    %v2213 = vadd.f32 %v2069, %v2207
    %v2214 = vld [vmem:[%s4] sm:$0x1]
    %v2216 = vlaneseq
    %v2217 = vshrl.u32 %v2216, 7
    %v2218 = vsub.s32 0, %v2217
    %v2219 = vrot.slane %v2214, %v2218
    %v2221 = vmul.f32 %v2210, %v2219
    %v2222 = vmul.f32 %v2211, %v2219
    %v2223 = vmul.f32 %v2212, %v2219
    %v2224 = vmul.f32 %v2213, %v2219
    %v2225 = vld [vmem:[%s5] sm:$0x1]
    %v2227 = vlaneseq
    %v2228 = vshrl.u32 %v2227, 7
    %v2229 = vsub.s32 0, %v2228
    %v2230 = vrot.slane %v2225, %v2229
    %v2232 = vadd.f32 %v2221, %v2230
    %v2233 = vadd.f32 %v2222, %v2230
    %v2234 = vadd.f32 %v2223, %v2230
    %v2235 = vadd.f32 %v2224, %v2230
    %v2236 = vmax.f32 %v2232, 0.0
    %v2237 = vmax.f32 %v2233, 0.0
    %v2238 = vmax.f32 %v2234, 0.0
    %v2239 = vmax.f32 %v2235, 0.0
    %2240 = vst [vmem:[#allocation3 + $0x1] sm:$0xff] %v2236
    %2241 = vst [vmem:[#allocation3 + $0x9] sm:$0xff] %v2237
    %2242 = vst [vmem:[#allocation3 + $0x11] sm:$0xff] %v2238
    %2243 = vst [vmem:[#allocation3 + $0x19] sm:$0xff] %v2239
    %v2244 = vld [vmem:[%s2] sm:$0xff]
    %v2245 = vld [vmem:[%s2 + $0x8] sm:$0xff]
    %v2246 = vld [vmem:[%s2 + $0x10] sm:$0xff]
    %v2247 = vld [vmem:[%s2 + $0x18] sm:$0xff]
    %vm2248 = vcmp.gt.f32.partialorder %v2244, 0.0
    %vm2249 = vcmp.gt.f32.partialorder %v2245, 0.0
    %vm2250 = vcmp.gt.f32.partialorder %v2246, 0.0
    %vm2251 = vcmp.gt.f32.partialorder %v2247, 0.0
    %v2252 = vld [vmem:[#allocation3] sm:$0xff]
    %v2253 = vld [vmem:[#allocation3 + $0x8] sm:$0xff]
    %v2254 = vld [vmem:[#allocation3 + $0x10] sm:$0xff]
    %v2255 = vld [vmem:[#allocation3 + $0x18] sm:$0xff]
    %v2256 = vsel %vm2248, 1, 0
    %v2257 = vsel %vm2249, 1, 0
    %v2258 = vsel %vm2250, 1, 0
    %v2259 = vsel %vm2251, 1, 0
    %2260 = vset.pattern.permute.xlu0 0
    %2261 = vperm.xlu0 %2260, %v2256
    %v2262 = vpop.permute.xlu0 %2261
    %2263 = vset.pattern.permute.xlu0 0
    %2264 = vperm.xlu0 %2263, %v2257
    %v2265 = vpop.permute.xlu0 %2264
    %2266 = vset.pattern.permute.xlu0 0
    %2267 = vperm.xlu0 %2266, %v2258
    %v2268 = vpop.permute.xlu0 %2267
    %2269 = vset.pattern.permute.xlu0 0
    %2270 = vperm.xlu0 %2269, %v2259
    %v2271 = vpop.permute.xlu0 %2270
    %vm2272 = vcmp.eq.s32.totalorder %v2262, 1
    %vm2273 = vcmp.eq.s32.totalorder %v2265, 1
    %vm2274 = vcmp.eq.s32.totalorder %v2268, 1
    %vm2275 = vcmp.eq.s32.totalorder %v2271, 1
    %v2276 = vsel %vm2272, %v2252, 0.0
    %v2277 = vsel %vm2273, %v2253, 0.0
    %v2278 = vsel %vm2274, %v2254, 0.0
    %v2279 = vsel %vm2275, %v2255, 0.0
    %v2280 = vld [vmem:[#allocation3 + $0x2] sm:$0xff]
    %v2281 = vld [vmem:[#allocation3 + $0xa] sm:$0xff]
    %v2282 = vld [vmem:[#allocation3 + $0x12] sm:$0xff]
    %v2283 = vld [vmem:[#allocation3 + $0x1a] sm:$0xff]
    %2284 = vset.pattern.permute.xlu0 2
    %2285 = vperm.xlu0 %2284, %v2256
    %v2286 = vpop.permute.xlu0 %2285
    %2287 = vset.pattern.permute.xlu0 2
    %2288 = vperm.xlu0 %2287, %v2257
    %v2289 = vpop.permute.xlu0 %2288
    %2290 = vset.pattern.permute.xlu0 2
    %2291 = vperm.xlu0 %2290, %v2258
    %v2292 = vpop.permute.xlu0 %2291
    %2293 = vset.pattern.permute.xlu0 2
    %2294 = vperm.xlu0 %2293, %v2259
    %v2295 = vpop.permute.xlu0 %2294
    %vm2296 = vcmp.eq.s32.totalorder %v2286, 1
    %vm2297 = vcmp.eq.s32.totalorder %v2289, 1
    %vm2298 = vcmp.eq.s32.totalorder %v2292, 1
    %vm2299 = vcmp.eq.s32.totalorder %v2295, 1
    %v2300 = vsel %vm2296, %v2280, 0.0
    %v2301 = vsel %vm2297, %v2281, 0.0
    %v2302 = vsel %vm2298, %v2282, 0.0
    %v2303 = vsel %vm2299, %v2283, 0.0
    %v2304 = vmax.f32 %v2276, %v2236
    %v2305 = vmax.f32 %v2277, %v2237
    %v2306 = vmax.f32 %v2278, %v2238
    %v2307 = vmax.f32 %v2279, %v2239
    %v2308 = vmax.f32 %v2304, %v2300
    %v2309 = vmax.f32 %v2305, %v2301
    %v2310 = vmax.f32 %v2306, %v2302
    %v2311 = vmax.f32 %v2307, %v2303
    %v2312 = vpack.c.bf16 %v2309, %v2308
    %v2313 = vpack.c.bf16 %v2311, %v2310
    %v2316 = vunpack.c.l.b16 %v2312
    %v2317 = vunpack.c.h.b16 %v2312
    %v2318 = vunpack.c.l.b16 %v2313
    %v2319 = vunpack.c.h.b16 %v2313
    %v2320 = vpack.c.b16 %v2316, %v2316
    %v2321 = vpack.c.b16 %v2317, %v2317
    %v2322 = vpack.c.b16 %v2318, %v2318
    %v2323 = vpack.c.b16 %v2319, %v2319
    %2328 = vst [vmem:[#allocation7] sm:$0xf] %v2320
    %2329 = vst [vmem:[#allocation7 + $0x4] sm:$0xf] %v2321
    %2330 = vst [vmem:[#allocation7 + $0x8] sm:$0xf] %v2322
    %2331 = vst [vmem:[#allocation7 + $0xc] sm:$0xf] %v2323
    // Predicated region
    $region30: #{tpu_custom_call.1} parent=1 // pred_check
      _
    $region31: #{tpu_custom_call.1} parent=1 // pred_check_branch
      %2333 = sbr.rel (0) target = $region33
    $region32: #{tpu_custom_call.1} parent=1 // pred_region
      %s2335 = ssub.s32 256, 256
      %2336 = vsyncadd [#allocation6], %s2335
      %s2337 = sshll.u32 [#allocation7], 4
      %s2338 = int_to_ptr.vmem [resolvable:$true] %s2337
      %2343 = dma.vmem_to_hbm [thread:$0]  %s2338, 256, %s6, [#allocation6], 64, 64, 4
    $region33: #{tpu_custom_call.1} parent=1 // pred_fallthru
      _
    // Predicated region
    $region34: #{tpu_custom_call.1} parent=1 // pred_check
      _
    $region35: #{tpu_custom_call.1} parent=1 // pred_check_branch
      %2345 = sbr.rel (0) target = $region37
    $region36: #{tpu_custom_call.1} parent=1 // pred_region
      %2346 = dma.done [#allocation6], 256
    $region37: #{tpu_custom_call.1} parent=1 // pred_fallthru
      _
    %2347 = vsyncpa [#allocation5], 1
    %2348 = vsyncpa [#allocation6], 1

</llo_original>
